<compile_context>
chip_gen: v7x
topology: tpu7x:2x2x1
jax: 0.10.0
libtpu: 0.0.40
codegen_flags: <defaults>
</compile_context>

<pallas_src>
from functools import partial

import jax
import jax.numpy as jnp
import numpy as np
from jax.experimental import pallas as pl
from jax.experimental.pallas import tpu as pltpu

LANE = 128          # output channels padded to a multiple of this (lane-dense stores)
MAX_TILE_M = 512    # max output-pixel rows per grid step


def _round_up(x, m):
    return ((x + m - 1) // m) * m


def _pick_tile_m(M):
    """Whole problem in one tile if small, 512-row tiles (>=2 grid steps) if big."""
    if M >= 2 * MAX_TILE_M:
        return MAX_TILE_M
    return _round_up(max(M, 8), 8)


# ----------------------------------------------------------------------------
# Pallas kernel: fused (conv-as-GEMM) + folded-BN bias (+ residual) (+ ReLU)
# ----------------------------------------------------------------------------
def _gemm_bn_act_kernel(*refs, relu, res_mode):
    """out = [ReLU]( P @ Wf + b  (+ R | + Ps @ Wsf + bs) ), f32 accumulation."""
    if res_mode == "proj":
        p_ref, w_ref, b_ref, sp_ref, sw_ref, sb_ref, out_ref = refs
    elif res_mode == "add":
        p_ref, w_ref, b_ref, r_ref, out_ref = refs
    else:
        p_ref, w_ref, b_ref, out_ref = refs

    # bf16 x bf16 -> f32 accumulate on the MXU.
    y = jnp.dot(p_ref[...], w_ref[...], preferred_element_type=jnp.float32)
    y = y + b_ref[...]                                   # folded-BN bias (f32)
    if res_mode == "proj":
        # fused 1x1 projection shortcut: second (tiny-K) MXU matmul + its bias
        y = y + jnp.dot(sp_ref[...], sw_ref[...],
                        preferred_element_type=jnp.float32) + sb_ref[...]
    elif res_mode == "add":
        y = y + r_ref[...].astype(jnp.float32)           # identity residual
    if relu:
        y = jnp.maximum(y, 0.0)
    out_ref[...] = y.astype(out_ref.dtype)


# ----------------------------------------------------------------------------
# Wrapper-side layout plumbing (im2col, BN fold, lane padding)
# ----------------------------------------------------------------------------
def _im2col(x, KH, KW, stride, pad):
    """(N,H,W,C) NHWC -> ((N*Ho*Wo, KH*KW*C) patch slab, Ho, Wo).  True-C contraction."""
    N, H, W, C = x.shape
    Ho = (H + 2 * pad - KH) // stride + 1
    Wo = (W + 2 * pad - KW) // stride + 1
    xp = jnp.pad(x, ((0, 0), (pad, pad), (pad, pad), (0, 0))) if pad else x
    taps = []
    for kh in range(KH):
        for kw in range(KW):
            taps.append(xp[:, kh:kh + (Ho - 1) * stride + 1:stride,
                            kw:kw + (Wo - 1) * stride + 1:stride, :])
    patches = jnp.concatenate(taps, axis=-1)             # (N, Ho, Wo, KH*KW*C)
    return patches.reshape(N * Ho * Wo, KH * KW * C), Ho, Wo


def _fold_bn_into_weights(w_oihw, scale, bias, cp_out):
    """-> bf16 (KH*KW*Cin, cp_out) scale-folded weight slab, f32 (1, cp_out) bias."""
    Cout, Cin, KH, KW = w_oihw.shape
    w = jnp.transpose(w_oihw, (2, 3, 1, 0)).astype(jnp.float32)   # (KH,KW,Cin,Cout)
    w = w * scale.reshape(1, 1, 1, Cout).astype(jnp.float32)      # fold BN scale (f32)
    w2d = w.reshape(KH * KW * Cin, Cout)
    w2d = jnp.pad(w2d, ((0, 0), (0, cp_out - Cout))).astype(jnp.bfloat16)
    b2d = jnp.pad(bias.astype(jnp.float32), (0, cp_out - Cout)).reshape(1, cp_out)
    return w2d, b2d


def conv_bn_act(x, w_oihw, scale, bias, *, stride, pad, relu,
                residual=None, shortcut=None):
    """Fused conv2d(no bias)+BN affine (+identity residual | +fused 1x1 projection)(+ReLU).

    x:        (N, H, W, Cin) bf16 NHWC activations (true channel count).
    residual: optional (N, Ho, Wo, Cout) identity-residual activations.
    shortcut: optional (x_in, w_1x1, scale_s, bias_s, stride_s) projection shortcut,
              fused into this kernel's epilogue as a second matmul.
    returns   (N, Ho, Wo, Cout) bf16 NHWC activations.
    """
    N = x.shape[0]
    Cout, _, KH, KW = w_oihw.shape
    cp_out = _round_up(Cout, LANE)
    out_dtype = jnp.bfloat16

    patches, Ho, Wo = _im2col(x, KH, KW, stride, pad)
    patches = patches.astype(jnp.bfloat16)
    w2d, b2d = _fold_bn_into_weights(w_oihw, scale, bias, cp_out)

    M, K = patches.shape
    tile_m = _pick_tile_m(M)
    Mp = _round_up(M, tile_m)
    if Mp != M:
        patches = jnp.pad(patches, ((0, Mp - M), (0, 0)))

    in_specs = [
        pl.BlockSpec((tile_m, K), lambda i: (i, 0)),      # streamed patch slab (bf16)
        pl.BlockSpec((K, cp_out), lambda i: (0, 0)),      # folded weights (bf16)
        pl.BlockSpec((1, cp_out), lambda i: (0, 0)),      # folded bias (f32)
    ]
    args = [patches, w2d, b2d]
    flops = 2 * Mp * K * cp_out
    vmem = 2 * (tile_m * K * 2 + K * cp_out * 2 + cp_out * 4 + tile_m * cp_out * 2)

    if residual is not None:
        res2d = residual.astype(jnp.bfloat16).reshape(-1, residual.shape[-1])
        assert res2d.shape[0] == M
        res2d = jnp.pad(res2d, ((0, Mp - M), (0, cp_out - res2d.shape[-1])))
        in_specs.append(pl.BlockSpec((tile_m, cp_out), lambda i: (i, 0)))
        args.append(res2d)
        vmem += 2 * tile_m * cp_out * 2
        res_mode = "add"
    elif shortcut is not None:
        sx, sw, s_scale, s_bias, s_stride = shortcut
        sxd = sx[:, ::s_stride, ::s_stride, :]            # 1x1-conv "im2col" = decimation
        sp = sxd.reshape(-1, sx.shape[-1]).astype(jnp.bfloat16)
        assert sp.shape[0] == M
        Ks = sp.shape[-1]
        if Mp != M:
            sp = jnp.pad(sp, ((0, Mp - M), (0, 0)))
        sw2d, sb2d = _fold_bn_into_weights(sw, s_scale, s_bias, cp_out)
        in_specs += [
            pl.BlockSpec((tile_m, Ks), lambda i: (i, 0)),
            pl.BlockSpec((Ks, cp_out), lambda i: (0, 0)),
            pl.BlockSpec((1, cp_out), lambda i: (0, 0)),
        ]
        args += [sp, sw2d, sb2d]
        flops += 2 * Mp * Ks * cp_out
        vmem += 2 * (tile_m * Ks * 2 + Ks * cp_out * 2 + cp_out * 4)
        res_mode = "proj"
    else:
        res_mode = "none"

    bytes_accessed = int(sum(int(np.prod(a.shape)) * a.dtype.itemsize for a in args)
                         + Mp * cp_out * 2)

    kernel = partial(_gemm_bn_act_kernel, relu=relu, res_mode=res_mode)
    out2d = pl.pallas_call(
        kernel,
        out_shape=jax.ShapeDtypeStruct((Mp, cp_out), out_dtype),
        grid=(Mp // tile_m,),
        in_specs=in_specs,
        out_specs=pl.BlockSpec((tile_m, cp_out), lambda i: (i, 0)),
        compiler_params=pltpu.CompilerParams(
            dimension_semantics=("parallel",),
            vmem_limit_bytes=min(100 * 2**20, max(32 * 2**20, int(1.5 * vmem)))),
        cost_estimate=pl.CostEstimate(
            flops=int(flops), transcendentals=0, bytes_accessed=bytes_accessed),
    )(*args)
    # Drop padded rows / padded output lanes -> true-channel NHWC activations.
    return out2d[:M, :Cout].reshape(N, Ho, Wo, Cout)


# ----------------------------------------------------------------------------
# ResNetBasicBlock / ResNetLayer forward
# ----------------------------------------------------------------------------
def basic_block_forward(x, p, *, downsampling):
    # conv3x3(stride=d) + BN + ReLU
    h = conv_bn_act(x, p["conv1_w"], *p["bn1"],
                    stride=downsampling, pad=1, relu=True)
    # conv3x3(stride=1) + BN, += residual (identity or fused 1x1 projection), ReLU
    if "shortcut_w" in p:
        return conv_bn_act(h, p["conv2_w"], *p["bn2"], stride=1, pad=1, relu=True,
                           shortcut=(x, p["shortcut_w"], *p["bn_s"], downsampling))
    return conv_bn_act(h, p["conv2_w"], *p["bn2"], stride=1, pad=1, relu=True,
                       residual=x)


@partial(jax.jit, static_argnums=(2,))
def resnet_layer_forward(x_nchw, blocks_params, downsamplings):
    x = jnp.transpose(x_nchw, (0, 2, 3, 1)).astype(jnp.bfloat16)   # NCHW -> NHWC bf16
    for p, d in zip(blocks_params, downsamplings):
        x = basic_block_forward(x, p, downsampling=d)
    return jnp.transpose(x, (0, 3, 1, 2)).astype(x_nchw.dtype)     # NHWC -> NCHW


# ----------------------------------------------------------------------------
# Deterministic parameter construction (synthetic, from PRNGKey)
# ----------------------------------------------------------------------------
def _conv_init(key, cout, cin, k):
    fan_in = cin * k * k
    return (jax.random.normal(key, (cout, cin, k, k), jnp.float32)
            / np.sqrt(fan_in))


def _bn_init(key, c, eps=1e-5):
    k1, k2, k3, k4 = jax.random.split(key, 4)
    gamma = 1.0 + 0.1 * jax.random.normal(k1, (c,), jnp.float32)
    beta = 0.1 * jax.random.normal(k2, (c,), jnp.float32)
    mean = 0.1 * jax.random.normal(k3, (c,), jnp.float32)
    var = jnp.abs(jax.random.normal(k4, (c,), jnp.float32)) + 0.5
    scale = gamma / jnp.sqrt(var + eps)
    bias = beta - mean * scale
    return scale, bias


def make_basic_block_params(key, cin, cout):
    ks = jax.random.split(key, 6)
    p = {
        "conv1_w": _conv_init(ks[0], cout, cin, 3),
        "bn1": _bn_init(ks[1], cout),
        "conv2_w": _conv_init(ks[2], cout, cout, 3),
        "bn2": _bn_init(ks[3], cout),
    }
    if cin != cout:  # should_apply_shortcut (expansion == 1 for basic block)
        p["shortcut_w"] = _conv_init(ks[4], cout, cin, 1)
        p["bn_s"] = _bn_init(ks[5], cout)
    return p


def make_resnet_layer_params(key, in_channels, out_channels, n):
    downsampling = 2 if in_channels != out_channels else 1
    keys = jax.random.split(key, n)
    params = [make_basic_block_params(keys[0], in_channels, out_channels)]
    downs = [downsampling]
    for i in range(1, n):
        params.append(make_basic_block_params(keys[i], out_channels, out_channels))
        downs.append(1)
    return params, downs


# ----------------------------------------------------------------------------
# Pure-JAX f32 reference (runtime sanity check of the Pallas kernels)
# ----------------------------------------------------------------------------
def _ref_conv_bn_act(x_nchw, w, scale, bias, *, stride, pad, relu, residual=None):
    y = jax.lax.conv_general_dilated(
        x_nchw, w, (stride, stride), [(pad, pad), (pad, pad)],
        dimension_numbers=("NCHW", "OIHW", "NCHW"))
    y = y * scale[None, :, None, None] + bias[None, :, None, None]
    if residual is not None:
        y = y + residual
    if relu:
        y = jnp.maximum(y, 0.0)
    return y


def _ref_resnet_layer(x_nchw, blocks_params, downsamplings):
    x = x_nchw
    for p, d in zip(blocks_params, downsamplings):
        if "shortcut_w" in p:
            residual = _ref_conv_bn_act(x, p["shortcut_w"], *p["bn_s"],
                                        stride=d, pad=0, relu=False)
        else:
            residual = x
        h = _ref_conv_bn_act(x, p["conv1_w"], *p["bn1"],
                             stride=d, pad=1, relu=True)
        x = _ref_conv_bn_act(h, p["conv2_w"], *p["bn2"],
                             stride=1, pad=1, relu=True, residual=residual)
    return x


# ----------------------------------------------------------------------------
if __name__ == "__main__":
    # ResNetLayer(in_channels=4, out_channels=8, block=ResNetBasicBlock, n=2)
    #   -> block 1: downsampling=2, 1x1-conv projection shortcut (fused in-kernel)
    #   -> block 2: downsampling=1, identity shortcut
    in_channels, out_channels, n = 4, 8, 2
    N, H, W = 2, 16, 16

    root = jax.random.PRNGKey(0)
    kx, kp = jax.random.split(root)
    x = jax.random.normal(kx, (N, in_channels, H, W), jnp.float32)  # NCHW input

    params, downs = make_resnet_layer_params(kp, in_channels, out_channels, n)

    out = jax.block_until_ready(resnet_layer_forward(x, params, tuple(downs)))
    ref = jax.block_until_ready(_ref_resnet_layer(x, params, downs))

    assert out.shape == (N, out_channels, H // 2, W // 2), out.shape
    # bf16 operands / bf16 inter-stage activations -> loosened tolerance vs f32 ref.
    max_abs = float(jnp.max(jnp.abs(out - ref)))
    rel_l2 = float(jnp.linalg.norm(out - ref) / (jnp.linalg.norm(ref) + 1e-12))
    if not (rel_l2 < 3e-2 and max_abs < 0.25):
        raise AssertionError(
            f"Pallas ResNetLayer mismatch: max_abs={max_abs}, rel_l2={rel_l2}")

    print("KERNEL_OK")
</pallas_src>

<mosaic_0001>
module attributes {stable_mosaic.version = 11 : i64} {
  func.func @_gemm_bn_act_kernel(%arg0: i32, %arg1: memref<128x36xbf16, #tpu.memory_space<vmem>>, %arg2: memref<36x128xbf16, #tpu.memory_space<vmem>>, %arg3: memref<1x128xf32, #tpu.memory_space<vmem>>, %arg4: memref<128x128xbf16, #tpu.memory_space<vmem>>) attributes {dimension_semantics = [#tpu.dimension_semantics<parallel>], iteration_bounds = array<i64: 1>, scalar_prefetch = 0 : i64, scratch_operands = 0 : i64, tpu.core_type = #tpu.core_type<tc>, window_params = [{transform_indices = @transform_0, window_bounds = array<i64: 128, 36>}, {pipeline_mode = #tpu.pipeline_mode<synchronous>, transform_indices = @transform_1, window_bounds = array<i64: 36, 128>}, {pipeline_mode = #tpu.pipeline_mode<synchronous>, transform_indices = @transform_2, window_bounds = array<i64: 1, 128>}, {transform_indices = @transform_3, window_bounds = array<i64: 128, 128>}]} {
    %c0 = arith.constant 0 : index
    %c0_0 = arith.constant 0 : index
    %0 = vector.load %arg1[%c0, %c0_0] : memref<128x36xbf16, #tpu.memory_space<vmem>>, vector<128x36xbf16>
    %c0_1 = arith.constant 0 : index
    %c0_2 = arith.constant 0 : index
    %1 = vector.load %arg2[%c0_1, %c0_2] : memref<36x128xbf16, #tpu.memory_space<vmem>>, vector<36x128xbf16>
    %cst = arith.constant dense<0.000000e+00> : vector<128x128xf32>
    %2 = tpu.matmul %0, %1, %cst {dimension_numbers = #tpu.dot_dimension_numbers<[1], [0], [0], [1], [0, 0, 1, 1], [], []>} : vector<128x36xbf16>, vector<36x128xbf16>, vector<128x128xf32> -> vector<128x128xf32>
    %c0_3 = arith.constant 0 : index
    %c0_4 = arith.constant 0 : index
    %3 = vector.load %arg3[%c0_3, %c0_4] : memref<1x128xf32, #tpu.memory_space<vmem>>, vector<1x128xf32>
    %4 = vector.broadcast %3 : vector<1x128xf32> to vector<128x128xf32>
    %5 = arith.addf %2, %4 : vector<128x128xf32>
    %cst_5 = arith.constant 0.000000e+00 : f32
    %6 = vector.broadcast %cst_5 : f32 to vector<128x128xf32>
    %7 = arith.maximumf %5, %6 : vector<128x128xf32>
    %8 = arith.truncf %7 : vector<128x128xf32> to vector<128x128xbf16>
    %c0_6 = arith.constant 0 : index
    %c0_7 = arith.constant 0 : index
    %9 = vector.load %arg4[%c0_6, %c0_7] : memref<128x128xbf16, #tpu.memory_space<vmem>>, vector<128x128xbf16>
    tpu.vector_store %arg4[%c0_6, %c0_7], %8 {strides = array<i32>} : memref<128x128xbf16, #tpu.memory_space<vmem>>, vector<128x128xbf16>,
    return
  }
  func.func @transform_0(%arg0: i32) -> (i32, i32) {
    %c0_i32 = arith.constant 0 : i32
    %c0_i32_0 = arith.constant 0 : i32
    return %arg0, %c0_i32 : i32, i32
  }
  func.func @transform_1(%arg0: i32) -> (i32, i32) {
    %c0_i32 = arith.constant 0 : i32
    %c0_i32_0 = arith.constant 0 : i32
    %c0_i32_1 = arith.constant 0 : i32
    return %c0_i32, %c0_i32_0 : i32, i32
  }
  func.func @transform_2(%arg0: i32) -> (i32, i32) {
    %c0_i32 = arith.constant 0 : i32
    %c0_i32_0 = arith.constant 0 : i32
    %c0_i32_1 = arith.constant 0 : i32
    return %c0_i32, %c0_i32_0 : i32, i32
  }
  func.func @transform_3(%arg0: i32) -> (i32, i32) {
    %c0_i32 = arith.constant 0 : i32
    %c0_i32_0 = arith.constant 0 : i32
    return %arg0, %c0_i32 : i32, i32
  }
}

module attributes {stable_mosaic.version = 11 : i64} {
  func.func @_gemm_bn_act_kernel(%arg0: i32, %arg1: memref<128x72xbf16, #tpu.memory_space<vmem>>, %arg2: memref<72x128xbf16, #tpu.memory_space<vmem>>, %arg3: memref<1x128xf32, #tpu.memory_space<vmem>>, %arg4: memref<128x4xbf16, #tpu.memory_space<vmem>>, %arg5: memref<4x128xbf16, #tpu.memory_space<vmem>>, %arg6: memref<1x128xf32, #tpu.memory_space<vmem>>, %arg7: memref<128x128xbf16, #tpu.memory_space<vmem>>) attributes {dimension_semantics = [#tpu.dimension_semantics<parallel>], iteration_bounds = array<i64: 1>, scalar_prefetch = 0 : i64, scratch_operands = 0 : i64, tpu.core_type = #tpu.core_type<tc>, window_params = [{transform_indices = @transform_0, window_bounds = array<i64: 128, 72>}, {pipeline_mode = #tpu.pipeline_mode<synchronous>, transform_indices = @transform_1, window_bounds = array<i64: 72, 128>}, {pipeline_mode = #tpu.pipeline_mode<synchronous>, transform_indices = @transform_2, window_bounds = array<i64: 1, 128>}, {transform_indices = @transform_3, window_bounds = array<i64: 128, 4>}, {pipeline_mode = #tpu.pipeline_mode<synchronous>, transform_indices = @transform_4, window_bounds = array<i64: 4, 128>}, {pipeline_mode = #tpu.pipeline_mode<synchronous>, transform_indices = @transform_5, window_bounds = array<i64: 1, 128>}, {transform_indices = @transform_6, window_bounds = array<i64: 128, 128>}]} {
    %c0 = arith.constant 0 : index
    %c0_0 = arith.constant 0 : index
    %0 = vector.load %arg1[%c0, %c0_0] : memref<128x72xbf16, #tpu.memory_space<vmem>>, vector<128x72xbf16>
    %c0_1 = arith.constant 0 : index
    %c0_2 = arith.constant 0 : index
    %1 = vector.load %arg2[%c0_1, %c0_2] : memref<72x128xbf16, #tpu.memory_space<vmem>>, vector<72x128xbf16>
    %cst = arith.constant dense<0.000000e+00> : vector<128x128xf32>
    %2 = tpu.matmul %0, %1, %cst {dimension_numbers = #tpu.dot_dimension_numbers<[1], [0], [0], [1], [0, 0, 1, 1], [], []>} : vector<128x72xbf16>, vector<72x128xbf16>, vector<128x128xf32> -> vector<128x128xf32>
    %c0_3 = arith.constant 0 : index
    %c0_4 = arith.constant 0 : index
    %3 = vector.load %arg3[%c0_3, %c0_4] : memref<1x128xf32, #tpu.memory_space<vmem>>, vector<1x128xf32>
    %4 = vector.broadcast %3 : vector<1x128xf32> to vector<128x128xf32>
    %5 = arith.addf %2, %4 : vector<128x128xf32>
    %c0_5 = arith.constant 0 : index
    %c0_6 = arith.constant 0 : index
    %6 = vector.load %arg4[%c0_5, %c0_6] : memref<128x4xbf16, #tpu.memory_space<vmem>>, vector<128x4xbf16>
    %c0_7 = arith.constant 0 : index
    %c0_8 = arith.constant 0 : index
    %7 = vector.load %arg5[%c0_7, %c0_8] : memref<4x128xbf16, #tpu.memory_space<vmem>>, vector<4x128xbf16>
    %cst_9 = arith.constant dense<0.000000e+00> : vector<128x128xf32>
    %8 = tpu.matmul %6, %7, %cst_9 {dimension_numbers = #tpu.dot_dimension_numbers<[1], [0], [0], [1], [0, 0, 1, 1], [], []>} : vector<128x4xbf16>, vector<4x128xbf16>, vector<128x128xf32> -> vector<128x128xf32>
    %9 = arith.addf %5, %8 : vector<128x128xf32>
    %c0_10 = arith.constant 0 : index
    %c0_11 = arith.constant 0 : index
    %10 = vector.load %arg6[%c0_10, %c0_11] : memref<1x128xf32, #tpu.memory_space<vmem>>, vector<1x128xf32>
    %11 = vector.broadcast %10 : vector<1x128xf32> to vector<128x128xf32>
    %12 = arith.addf %9, %11 : vector<128x128xf32>
    %cst_12 = arith.constant 0.000000e+00 : f32
    %13 = vector.broadcast %cst_12 : f32 to vector<128x128xf32>
    %14 = arith.maximumf %12, %13 : vector<128x128xf32>
    %15 = arith.truncf %14 : vector<128x128xf32> to vector<128x128xbf16>
    %c0_13 = arith.constant 0 : index
    %c0_14 = arith.constant 0 : index
    %16 = vector.load %arg7[%c0_13, %c0_14] : memref<128x128xbf16, #tpu.memory_space<vmem>>, vector<128x128xbf16>
    tpu.vector_store %arg7[%c0_13, %c0_14], %15 {strides = array<i32>} : memref<128x128xbf16, #tpu.memory_space<vmem>>, vector<128x128xbf16>,
    return
  }
  func.func @transform_0(%arg0: i32) -> (i32, i32) {
    %c0_i32 = arith.constant 0 : i32
    %c0_i32_0 = arith.constant 0 : i32
    return %arg0, %c0_i32 : i32, i32
  }
  func.func @transform_1(%arg0: i32) -> (i32, i32) {
    %c0_i32 = arith.constant 0 : i32
    %c0_i32_0 = arith.constant 0 : i32
    %c0_i32_1 = arith.constant 0 : i32
    return %c0_i32, %c0_i32_0 : i32, i32
  }
  func.func @transform_2(%arg0: i32) -> (i32, i32) {
    %c0_i32 = arith.constant 0 : i32
    %c0_i32_0 = arith.constant 0 : i32
    %c0_i32_1 = arith.constant 0 : i32
    return %c0_i32, %c0_i32_0 : i32, i32
  }
  func.func @transform_3(%arg0: i32) -> (i32, i32) {
    %c0_i32 = arith.constant 0 : i32
    %c0_i32_0 = arith.constant 0 : i32
    return %arg0, %c0_i32 : i32, i32
  }
  func.func @transform_4(%arg0: i32) -> (i32, i32) {
    %c0_i32 = arith.constant 0 : i32
    %c0_i32_0 = arith.constant 0 : i32
    %c0_i32_1 = arith.constant 0 : i32
    return %c0_i32, %c0_i32_0 : i32, i32
  }
  func.func @transform_5(%arg0: i32) -> (i32, i32) {
    %c0_i32 = arith.constant 0 : i32
    %c0_i32_0 = arith.constant 0 : i32
    %c0_i32_1 = arith.constant 0 : i32
    return %c0_i32, %c0_i32_0 : i32, i32
  }
  func.func @transform_6(%arg0: i32) -> (i32, i32) {
    %c0_i32 = arith.constant 0 : i32
    %c0_i32_0 = arith.constant 0 : i32
    return %arg0, %c0_i32 : i32, i32
  }
}

module attributes {stable_mosaic.version = 11 : i64} {
  func.func @_gemm_bn_act_kernel(%arg0: i32, %arg1: memref<128x72xbf16, #tpu.memory_space<vmem>>, %arg2: memref<72x128xbf16, #tpu.memory_space<vmem>>, %arg3: memref<1x128xf32, #tpu.memory_space<vmem>>, %arg4: memref<128x128xbf16, #tpu.memory_space<vmem>>) attributes {dimension_semantics = [#tpu.dimension_semantics<parallel>], iteration_bounds = array<i64: 1>, scalar_prefetch = 0 : i64, scratch_operands = 0 : i64, tpu.core_type = #tpu.core_type<tc>, window_params = [{transform_indices = @transform_0, window_bounds = array<i64: 128, 72>}, {pipeline_mode = #tpu.pipeline_mode<synchronous>, transform_indices = @transform_1, window_bounds = array<i64: 72, 128>}, {pipeline_mode = #tpu.pipeline_mode<synchronous>, transform_indices = @transform_2, window_bounds = array<i64: 1, 128>}, {transform_indices = @transform_3, window_bounds = array<i64: 128, 128>}]} {
    %c0 = arith.constant 0 : index
    %c0_0 = arith.constant 0 : index
    %0 = vector.load %arg1[%c0, %c0_0] : memref<128x72xbf16, #tpu.memory_space<vmem>>, vector<128x72xbf16>
    %c0_1 = arith.constant 0 : index
    %c0_2 = arith.constant 0 : index
    %1 = vector.load %arg2[%c0_1, %c0_2] : memref<72x128xbf16, #tpu.memory_space<vmem>>, vector<72x128xbf16>
    %cst = arith.constant dense<0.000000e+00> : vector<128x128xf32>
    %2 = tpu.matmul %0, %1, %cst {dimension_numbers = #tpu.dot_dimension_numbers<[1], [0], [0], [1], [0, 0, 1, 1], [], []>} : vector<128x72xbf16>, vector<72x128xbf16>, vector<128x128xf32> -> vector<128x128xf32>
    %c0_3 = arith.constant 0 : index
    %c0_4 = arith.constant 0 : index
    %3 = vector.load %arg3[%c0_3, %c0_4] : memref<1x128xf32, #tpu.memory_space<vmem>>, vector<1x128xf32>
    %4 = vector.broadcast %3 : vector<1x128xf32> to vector<128x128xf32>
    %5 = arith.addf %2, %4 : vector<128x128xf32>
    %cst_5 = arith.constant 0.000000e+00 : f32
    %6 = vector.broadcast %cst_5 : f32 to vector<128x128xf32>
    %7 = arith.maximumf %5, %6 : vector<128x128xf32>
    %8 = arith.truncf %7 : vector<128x128xf32> to vector<128x128xbf16>
    %c0_6 = arith.constant 0 : index
    %c0_7 = arith.constant 0 : index
    %9 = vector.load %arg4[%c0_6, %c0_7] : memref<128x128xbf16, #tpu.memory_space<vmem>>, vector<128x128xbf16>
    tpu.vector_store %arg4[%c0_6, %c0_7], %8 {strides = array<i32>} : memref<128x128xbf16, #tpu.memory_space<vmem>>, vector<128x128xbf16>,
    return
  }
  func.func @transform_0(%arg0: i32) -> (i32, i32) {
    %c0_i32 = arith.constant 0 : i32
    %c0_i32_0 = arith.constant 0 : i32
    return %arg0, %c0_i32 : i32, i32
  }
  func.func @transform_1(%arg0: i32) -> (i32, i32) {
    %c0_i32 = arith.constant 0 : i32
    %c0_i32_0 = arith.constant 0 : i32
    %c0_i32_1 = arith.constant 0 : i32
    return %c0_i32, %c0_i32_0 : i32, i32
  }
  func.func @transform_2(%arg0: i32) -> (i32, i32) {
    %c0_i32 = arith.constant 0 : i32
    %c0_i32_0 = arith.constant 0 : i32
    %c0_i32_1 = arith.constant 0 : i32
    return %c0_i32, %c0_i32_0 : i32, i32
  }
  func.func @transform_3(%arg0: i32) -> (i32, i32) {
    %c0_i32 = arith.constant 0 : i32
    %c0_i32_0 = arith.constant 0 : i32
    return %arg0, %c0_i32 : i32, i32
  }
}

module attributes {stable_mosaic.version = 11 : i64} {
  func.func @_gemm_bn_act_kernel(%arg0: i32, %arg1: memref<128x72xbf16, #tpu.memory_space<vmem>>, %arg2: memref<72x128xbf16, #tpu.memory_space<vmem>>, %arg3: memref<1x128xf32, #tpu.memory_space<vmem>>, %arg4: memref<128x128xbf16, #tpu.memory_space<vmem>>, %arg5: memref<128x128xbf16, #tpu.memory_space<vmem>>) attributes {dimension_semantics = [#tpu.dimension_semantics<parallel>], iteration_bounds = array<i64: 1>, scalar_prefetch = 0 : i64, scratch_operands = 0 : i64, tpu.core_type = #tpu.core_type<tc>, window_params = [{transform_indices = @transform_0, window_bounds = array<i64: 128, 72>}, {pipeline_mode = #tpu.pipeline_mode<synchronous>, transform_indices = @transform_1, window_bounds = array<i64: 72, 128>}, {pipeline_mode = #tpu.pipeline_mode<synchronous>, transform_indices = @transform_2, window_bounds = array<i64: 1, 128>}, {transform_indices = @transform_3, window_bounds = array<i64: 128, 128>}, {transform_indices = @transform_4, window_bounds = array<i64: 128, 128>}]} {
    %c0 = arith.constant 0 : index
    %c0_0 = arith.constant 0 : index
    %0 = vector.load %arg1[%c0, %c0_0] : memref<128x72xbf16, #tpu.memory_space<vmem>>, vector<128x72xbf16>
    %c0_1 = arith.constant 0 : index
    %c0_2 = arith.constant 0 : index
    %1 = vector.load %arg2[%c0_1, %c0_2] : memref<72x128xbf16, #tpu.memory_space<vmem>>, vector<72x128xbf16>
    %cst = arith.constant dense<0.000000e+00> : vector<128x128xf32>
    %2 = tpu.matmul %0, %1, %cst {dimension_numbers = #tpu.dot_dimension_numbers<[1], [0], [0], [1], [0, 0, 1, 1], [], []>} : vector<128x72xbf16>, vector<72x128xbf16>, vector<128x128xf32> -> vector<128x128xf32>
    %c0_3 = arith.constant 0 : index
    %c0_4 = arith.constant 0 : index
    %3 = vector.load %arg3[%c0_3, %c0_4] : memref<1x128xf32, #tpu.memory_space<vmem>>, vector<1x128xf32>
    %4 = vector.broadcast %3 : vector<1x128xf32> to vector<128x128xf32>
    %5 = arith.addf %2, %4 : vector<128x128xf32>
    %c0_5 = arith.constant 0 : index
    %c0_6 = arith.constant 0 : index
    %6 = vector.load %arg4[%c0_5, %c0_6] : memref<128x128xbf16, #tpu.memory_space<vmem>>, vector<128x128xbf16>
    %7 = arith.extf %6 : vector<128x128xbf16> to vector<128x128xf32>
    %8 = arith.addf %5, %7 : vector<128x128xf32>
    %cst_7 = arith.constant 0.000000e+00 : f32
    %9 = vector.broadcast %cst_7 : f32 to vector<128x128xf32>
    %10 = arith.maximumf %8, %9 : vector<128x128xf32>
    %11 = arith.truncf %10 : vector<128x128xf32> to vector<128x128xbf16>
    %c0_8 = arith.constant 0 : index
    %c0_9 = arith.constant 0 : index
    %12 = vector.load %arg5[%c0_8, %c0_9] : memref<128x128xbf16, #tpu.memory_space<vmem>>, vector<128x128xbf16>
    tpu.vector_store %arg5[%c0_8, %c0_9], %11 {strides = array<i32>} : memref<128x128xbf16, #tpu.memory_space<vmem>>, vector<128x128xbf16>,
    return
  }
  func.func @transform_0(%arg0: i32) -> (i32, i32) {
    %c0_i32 = arith.constant 0 : i32
    %c0_i32_0 = arith.constant 0 : i32
    return %arg0, %c0_i32 : i32, i32
  }
  func.func @transform_1(%arg0: i32) -> (i32, i32) {
    %c0_i32 = arith.constant 0 : i32
    %c0_i32_0 = arith.constant 0 : i32
    %c0_i32_1 = arith.constant 0 : i32
    return %c0_i32, %c0_i32_0 : i32, i32
  }
  func.func @transform_2(%arg0: i32) -> (i32, i32) {
    %c0_i32 = arith.constant 0 : i32
    %c0_i32_0 = arith.constant 0 : i32
    %c0_i32_1 = arith.constant 0 : i32
    return %c0_i32, %c0_i32_0 : i32, i32
  }
  func.func @transform_3(%arg0: i32) -> (i32, i32) {
    %c0_i32 = arith.constant 0 : i32
    %c0_i32_0 = arith.constant 0 : i32
    return %arg0, %c0_i32 : i32, i32
  }
  func.func @transform_4(%arg0: i32) -> (i32, i32) {
    %c0_i32 = arith.constant 0 : i32
    %c0_i32_0 = arith.constant 0 : i32
    return %arg0, %c0_i32 : i32, i32
  }
}

</mosaic_0001>

<llo_original>
// kernel: resnet_layer_forward.4
$region0: #{resnet_layer_forward.4}
  #allocation0 [shape = 'u32[]', space=smem, size = 0x4, offset = 0x4, fixed_abs, tag = 'smem constant byte address 0x4 - core index']
  #allocation1 [shape = 'u32[144,128]{1,0:T(1,128)}', space=vmem, size = 0x12000, scoped, tag = 'internal scratch']
  %s0 = inlined_call_operand.vmem [shape: bf16[128,36], index: 0, kind: input, shape index: {}]
  %s1 = inlined_call_operand.vmem [shape: bf16[36,128], index: 1, kind: input, shape index: {}]
  %s2 = inlined_call_operand.vmem [shape: f32[1,128], index: 2, kind: input, shape index: {}]
  %s3 = inlined_call_operand.vmem [shape: bf16[128,128], index: 3, kind: output, shape index: {}]
  %s4 = sld [smem:[#allocation0]]
  $region22: #{resnet_layer_forward.4} parent=0
    _
  %s6 = ssub.s32 1, %s4
  %s7 = scalar_select 0, %s6, %s4
  // Predicated region
  $region2: #{resnet_layer_forward.4} parent=0 // pred_check
    _
  $region3: #{resnet_layer_forward.4} parent=0 // pred_check_branch
    %9 = sbr.rel (0) target = $region5
  $region4: #{resnet_layer_forward.4} parent=0 // pred_region
    _
  $region5: #{resnet_layer_forward.4} parent=0 // pred_fallthru
    _
  // Predicated region
  $region6: #{resnet_layer_forward.4} parent=0 // pred_check
    _
  $region7: #{resnet_layer_forward.4} parent=0 // pred_check_branch
    %11 = sbr.rel (0) target = $region9
  $region8: #{resnet_layer_forward.4} parent=0 // pred_region
    _
  $region9: #{resnet_layer_forward.4} parent=0 // pred_fallthru
    _
  // Predicated region
  $region10: #{resnet_layer_forward.4} parent=0 // pred_check
    _
  $region11: #{resnet_layer_forward.4} parent=0 // pred_check_branch
    %13 = sbr.rel (0) target = $region13
  $region12: #{resnet_layer_forward.4} parent=0 // pred_region
    _
  $region13: #{resnet_layer_forward.4} parent=0 // pred_fallthru
    _
  %v15 = vld [vmem:[%s0] sm:$0xf]
  %v16 = vld [vmem:[%s0 + $0x4] sm:$0xf]
  %v17 = vld [vmem:[%s0 + $0x8] sm:$0xf]
  %v18 = vld [vmem:[%s0 + $0xc] sm:$0xf]
  %v19 = vld [vmem:[%s0 + $0x10] sm:$0xf]
  %v20 = vld [vmem:[%s0 + $0x14] sm:$0xf]
  %v21 = vld [vmem:[%s0 + $0x18] sm:$0xf]
  %v22 = vld [vmem:[%s0 + $0x1c] sm:$0xf]
  %v23 = vld [vmem:[%s0 + $0x20] sm:$0xf]
  %v24 = vld [vmem:[%s0 + $0x24] sm:$0xf]
  %v25 = vld [vmem:[%s0 + $0x28] sm:$0xf]
  %v26 = vld [vmem:[%s0 + $0x2c] sm:$0xf]
  %v27 = vld [vmem:[%s0 + $0x30] sm:$0xf]
  %v28 = vld [vmem:[%s0 + $0x34] sm:$0xf]
  %v29 = vld [vmem:[%s0 + $0x38] sm:$0xf]
  %v30 = vld [vmem:[%s0 + $0x3c] sm:$0xf]
  %v31 = vld [vmem:[%s1] sm:$0xf]
  %v32 = vld [vmem:[%s1 + $0x4] sm:$0xf]
  %v33 = vld [vmem:[%s1 + $0x8] sm:$0xf]
  %v34 = vld [vmem:[%s1 + $0xc] sm:$0xf]
  %v35 = vld [vmem:[%s1 + $0x10] sm:$0x3]
  %v36 = vld [vmem:[%s2] sm:$0x1]
  %v38 = vlaneseq
  %v39 = vshrl.u32 %v38, 7
  %v40 = vsub.s32 0, %v39
  %v41 = vrot.slane %v36, %v40
  %v59 = vunpack.c.l.b16 %v15
  %v60 = vunpack.c.l.b16 %v16
  %v61 = vunpack.c.l.b16 %v17
  %v62 = vunpack.c.l.b16 %v18
  %v63 = vunpack.c.l.b16 %v19
  %v64 = vunpack.c.l.b16 %v20
  %v65 = vunpack.c.l.b16 %v21
  %v66 = vunpack.c.l.b16 %v22
  %v67 = vunpack.c.l.b16 %v23
  %v68 = vunpack.c.l.b16 %v24
  %v69 = vunpack.c.l.b16 %v25
  %v70 = vunpack.c.l.b16 %v26
  %v71 = vunpack.c.l.b16 %v27
  %v72 = vunpack.c.l.b16 %v28
  %v73 = vunpack.c.l.b16 %v29
  %v74 = vunpack.c.l.b16 %v30
  %v75 = vpack.c.b16 %v60, %v59
  %v76 = vpack.c.b16 %v62, %v61
  %v77 = vpack.c.b16 %v64, %v63
  %v78 = vpack.c.b16 %v66, %v65
  %v79 = vpack.c.b16 %v68, %v67
  %v80 = vpack.c.b16 %v70, %v69
  %v81 = vpack.c.b16 %v72, %v71
  %v82 = vpack.c.b16 %v74, %v73
  %v88 = vunpack.c.l.b16 %v31
  %v89 = vunpack.c.l.b16 %v32
  %v90 = vunpack.c.l.b16 %v33
  %v91 = vunpack.c.l.b16 %v34
  %v92 = vunpack.c.l.b16 %v35
  %v93 = vpack.c.b16 %v89, %v88
  %v94 = vpack.c.b16 %v91, %v90
  %v95 = vpack.c.b16 %v92, %v92
  %vm98 = vcmask 293888
  %v100 = vsel %vm98, %v75, 0
  %v103 = vsel %vm98, %v76, 0
  %v106 = vsel %vm98, %v77, 0
  %v109 = vsel %vm98, %v78, 0
  %v112 = vsel %vm98, %v79, 0
  %v115 = vsel %vm98, %v80, 0
  %v118 = vsel %vm98, %v81, 0
  %v121 = vsel %vm98, %v82, 0
  %vm123 = vcmask 1041408
  %v125 = vsel %vm123, %v95, 0
  %127 = vmatprep.subr.bf16.mxu0 0
  %128 = vmatpush1.bf16.msra.mxu0 %v93
  %129 = vmatprep.subr.bf16.mxu0 0
  %130 = vmatpush1.bf16.msra.mxu0 %v94
  %131 = vmatprep.subr.bf16.mxu0 0
  %132 = vmatpush1.bf16.msra.mxu0 %v125
  %133 = vmatprep.subr.bf16.mxu0 0
  %134 = vmatpush1.bf16.msra.mxu0 0
  %135 = vmatprep.subr.bf16.mxu0 0
  %136 = vmatpush1.bf16.msra.mxu0 0
  %137 = vmatprep.subr.bf16.mxu0 0
  %138 = vmatpush1.bf16.msra.mxu0 0
  %139 = vmatprep.subr.bf16.mxu0 0
  %140 = vmatpush1.bf16.msra.mxu0 0
  %141 = vmatprep.subr.bf16.mxu0 0
  %142 = vmatpush1.bf16.msra.mxu0 0
  %143 = vmatprep.subr.bf16.mxu0 0
  %144 = vmatpush1.bf16.msra.mxu0 0
  %145 = vmatprep.subr.bf16.mxu0 0
  %146 = vmatpush1.bf16.msra.mxu0 0
  %147 = vmatprep.subr.bf16.mxu0 0
  %148 = vmatpush1.bf16.msra.mxu0 0
  %149 = vmatprep.subr.bf16.mxu0 0
  %150 = vmatpush1.bf16.msra.mxu0 0
  %151 = vmatprep.subr.bf16.mxu0 0
  %152 = vmatpush1.bf16.msra.mxu0 0
  %153 = vmatprep.subr.bf16.mxu0 0
  %154 = vmatpush1.bf16.msra.mxu0 0
  %155 = vmatprep.subr.bf16.mxu0 0
  %156 = vmatpush1.bf16.msra.mxu0 0
  %157 = vmatprep.subr.bf16.mxu0 0
  %158 = vmatpush1.bf16.msra.mxu0 0
  %159 = vmatprep.mubr.bf16.mxu0 0
  %160 = vmatmul.mubr.bf16.gmra.mrb[0].mxu0 %v100
  %v161 = vpop.f32.mrb[0].mxu0
  %v162 = vadd.f32 %v41, %v161
  %v163 = vpop.f32.mrb[0].mxu0
  %v164 = vpop.f32.mrb[0].mxu0
  %v165 = vadd.f32 %v41, %v164
  %v166 = vpop.f32.mrb[0].mxu0
  %167 = vmatprep.mubr.bf16.mxu0 0
  %168 = vmatmul.mubr.bf16.gmra.mrb[0].mxu0 %v103
  %v169 = vpop.f32.mrb[0].mxu0
  %v170 = vadd.f32 %v41, %v169
  %v171 = vpop.f32.mrb[0].mxu0
  %v172 = vpop.f32.mrb[0].mxu0
  %v173 = vadd.f32 %v41, %v172
  %v174 = vpop.f32.mrb[0].mxu0
  %175 = vmatprep.mubr.bf16.mxu0 0
  %176 = vmatmul.mubr.bf16.gmra.mrb[0].mxu0 %v106
  %v177 = vpop.f32.mrb[0].mxu0
  %v178 = vadd.f32 %v41, %v177
  %v179 = vpop.f32.mrb[0].mxu0
  %v180 = vpop.f32.mrb[0].mxu0
  %v181 = vadd.f32 %v41, %v180
  %v182 = vpop.f32.mrb[0].mxu0
  %183 = vmatprep.mubr.bf16.mxu0 0
  %184 = vmatmul.mubr.bf16.gmra.mrb[0].mxu0 %v109
  %v185 = vpop.f32.mrb[0].mxu0
  %v186 = vadd.f32 %v41, %v185
  %v187 = vpop.f32.mrb[0].mxu0
  %v188 = vpop.f32.mrb[0].mxu0
  %v189 = vadd.f32 %v41, %v188
  %v190 = vpop.f32.mrb[0].mxu0
  %191 = vmatprep.mubr.bf16.mxu0 0
  %192 = vmatmul.mubr.bf16.gmra.mrb[0].mxu0 %v112
  %v193 = vpop.f32.mrb[0].mxu0
  %v194 = vadd.f32 %v41, %v193
  %v195 = vpop.f32.mrb[0].mxu0
  %v196 = vpop.f32.mrb[0].mxu0
  %v197 = vadd.f32 %v41, %v196
  %v198 = vpop.f32.mrb[0].mxu0
  %199 = vmatprep.mubr.bf16.mxu0 0
  %200 = vmatmul.mubr.bf16.gmra.mrb[0].mxu0 %v115
  %v201 = vpop.f32.mrb[0].mxu0
  %v202 = vadd.f32 %v41, %v201
  %v203 = vpop.f32.mrb[0].mxu0
  %v204 = vpop.f32.mrb[0].mxu0
  %v205 = vadd.f32 %v41, %v204
  %v206 = vpop.f32.mrb[0].mxu0
  %207 = vmatprep.mubr.bf16.mxu0 0
  %208 = vmatmul.mubr.bf16.gmra.mrb[0].mxu0 %v118
  %v209 = vpop.f32.mrb[0].mxu0
  %v210 = vadd.f32 %v41, %v209
  %v211 = vpop.f32.mrb[0].mxu0
  %v212 = vpop.f32.mrb[0].mxu0
  %v213 = vadd.f32 %v41, %v212
  %v214 = vpop.f32.mrb[0].mxu0
  %215 = vmatprep.mubr.bf16.mxu0 0
  %216 = vmatmul.mubr.bf16.gmra.mrb[0].mxu0 %v121
  %v217 = vpop.f32.mrb[0].mxu0
  %v218 = vadd.f32 %v41, %v217
  %v219 = vpop.f32.mrb[0].mxu0
  %v220 = vpop.f32.mrb[0].mxu0
  %v221 = vadd.f32 %v41, %v220
  %v222 = vpop.f32.mrb[0].mxu0
  %223 = vdwg.mxu0
  %v224 = vmax.f32 %v162, 0.0
  %v225 = vmax.f32 %v165, 0.0
  %v226 = vmax.f32 %v170, 0.0
  %v227 = vmax.f32 %v173, 0.0
  %v228 = vmax.f32 %v178, 0.0
  %v229 = vmax.f32 %v181, 0.0
  %v230 = vmax.f32 %v186, 0.0
  %v231 = vmax.f32 %v189, 0.0
  %v232 = vmax.f32 %v194, 0.0
  %v233 = vmax.f32 %v197, 0.0
  %v234 = vmax.f32 %v202, 0.0
  %v235 = vmax.f32 %v205, 0.0
  %v236 = vmax.f32 %v210, 0.0
  %v237 = vmax.f32 %v213, 0.0
  %v238 = vmax.f32 %v218, 0.0
  %v239 = vmax.f32 %v221, 0.0
  %v240 = vpack.c.bf16 %v225, %v224
  %v241 = vpack.c.bf16 %v227, %v226
  %v242 = vpack.c.bf16 %v229, %v228
  %v243 = vpack.c.bf16 %v231, %v230
  %v244 = vpack.c.bf16 %v233, %v232
  %v245 = vpack.c.bf16 %v235, %v234
  %v246 = vpack.c.bf16 %v237, %v236
  %v247 = vpack.c.bf16 %v239, %v238
  %v256 = vunpack.c.l.b16 %v240
  %v257 = vunpack.c.h.b16 %v240
  %v258 = vunpack.c.l.b16 %v241
  %v259 = vunpack.c.h.b16 %v241
  %v260 = vunpack.c.l.b16 %v242
  %v261 = vunpack.c.h.b16 %v242
  %v262 = vunpack.c.l.b16 %v243
  %v263 = vunpack.c.h.b16 %v243
  %v264 = vunpack.c.l.b16 %v244
  %v265 = vunpack.c.h.b16 %v244
  %v266 = vunpack.c.l.b16 %v245
  %v267 = vunpack.c.h.b16 %v245
  %v268 = vunpack.c.l.b16 %v246
  %v269 = vunpack.c.h.b16 %v246
  %v270 = vunpack.c.l.b16 %v247
  %v271 = vunpack.c.h.b16 %v247
  %v272 = vpack.c.b16 %v256, %v256
  %v273 = vpack.c.b16 %v257, %v257
  %v274 = vpack.c.b16 %v258, %v258
  %v275 = vpack.c.b16 %v259, %v259
  %v276 = vpack.c.b16 %v260, %v260
  %v277 = vpack.c.b16 %v261, %v261
  %v278 = vpack.c.b16 %v262, %v262
  %v279 = vpack.c.b16 %v263, %v263
  %v280 = vpack.c.b16 %v264, %v264
  %v281 = vpack.c.b16 %v265, %v265
  %v282 = vpack.c.b16 %v266, %v266
  %v283 = vpack.c.b16 %v267, %v267
  %v284 = vpack.c.b16 %v268, %v268
  %v285 = vpack.c.b16 %v269, %v269
  %v286 = vpack.c.b16 %v270, %v270
  %v287 = vpack.c.b16 %v271, %v271
  %304 = vst [vmem:[%s3] sm:$0xf] %v272
  %305 = vst [vmem:[%s3 + $0x4] sm:$0xf] %v273
  %306 = vst [vmem:[%s3 + $0x8] sm:$0xf] %v274
  %307 = vst [vmem:[%s3 + $0xc] sm:$0xf] %v275
  %308 = vst [vmem:[%s3 + $0x10] sm:$0xf] %v276
  %309 = vst [vmem:[%s3 + $0x14] sm:$0xf] %v277
  %310 = vst [vmem:[%s3 + $0x18] sm:$0xf] %v278
  %311 = vst [vmem:[%s3 + $0x1c] sm:$0xf] %v279
  %312 = vst [vmem:[%s3 + $0x20] sm:$0xf] %v280
  %313 = vst [vmem:[%s3 + $0x24] sm:$0xf] %v281
  %314 = vst [vmem:[%s3 + $0x28] sm:$0xf] %v282
  %315 = vst [vmem:[%s3 + $0x2c] sm:$0xf] %v283
  %316 = vst [vmem:[%s3 + $0x30] sm:$0xf] %v284
  %317 = vst [vmem:[%s3 + $0x34] sm:$0xf] %v285
  %318 = vst [vmem:[%s3 + $0x38] sm:$0xf] %v286
  %319 = vst [vmem:[%s3 + $0x3c] sm:$0xf] %v287
  // Predicated region
  $region14: #{resnet_layer_forward.4} parent=0 // pred_check
    _
  $region15: #{resnet_layer_forward.4} parent=0 // pred_check_branch
    %321 = sbr.rel (0) target = $region17
  $region16: #{resnet_layer_forward.4} parent=0 // pred_region
    _
  $region17: #{resnet_layer_forward.4} parent=0 // pred_fallthru
    _
  // Predicated region
  $region18: #{resnet_layer_forward.4} parent=0 // pred_check
    _
  $region19: #{resnet_layer_forward.4} parent=0 // pred_check_branch
    %323 = sbr.rel (0) target = $region21
  $region20: #{resnet_layer_forward.4} parent=0 // pred_region
    _
  $region21: #{resnet_layer_forward.4} parent=0 // pred_fallthru
    _

// kernel: resnet_layer_forward.6
$region0: #{resnet_layer_forward.6}
  #allocation0 [shape = 'u32[]', space=smem, size = 0x4, offset = 0x4, fixed_abs, tag = 'smem constant byte address 0x4 - core index']
  #allocation1 [shape = 'u32[144,128]{1,0:T(1,128)}', space=vmem, size = 0x12000, scoped, tag = 'internal scratch']
  %s0 = inlined_call_operand.vmem [shape: bf16[128,72], index: 0, kind: input, shape index: {}]
  %s1 = inlined_call_operand.vmem [shape: bf16[72,128], index: 1, kind: input, shape index: {}]
  %s2 = inlined_call_operand.vmem [shape: f32[1,128], index: 2, kind: input, shape index: {}]
  %s3 = inlined_call_operand.vmem [shape: bf16[128,128], index: 3, kind: output, shape index: {}]
  %s4 = sld [smem:[#allocation0]]
  $region22: #{resnet_layer_forward.6} parent=0
    _
  %s6 = ssub.s32 1, %s4
  %s7 = scalar_select 0, %s6, %s4
  // Predicated region
  $region2: #{resnet_layer_forward.6} parent=0 // pred_check
    _
  $region3: #{resnet_layer_forward.6} parent=0 // pred_check_branch
    %9 = sbr.rel (0) target = $region5
  $region4: #{resnet_layer_forward.6} parent=0 // pred_region
    _
  $region5: #{resnet_layer_forward.6} parent=0 // pred_fallthru
    _
  // Predicated region
  $region6: #{resnet_layer_forward.6} parent=0 // pred_check
    _
  $region7: #{resnet_layer_forward.6} parent=0 // pred_check_branch
    %11 = sbr.rel (0) target = $region9
  $region8: #{resnet_layer_forward.6} parent=0 // pred_region
    _
  $region9: #{resnet_layer_forward.6} parent=0 // pred_fallthru
    _
  // Predicated region
  $region10: #{resnet_layer_forward.6} parent=0 // pred_check
    _
  $region11: #{resnet_layer_forward.6} parent=0 // pred_check_branch
    %13 = sbr.rel (0) target = $region13
  $region12: #{resnet_layer_forward.6} parent=0 // pred_region
    _
  $region13: #{resnet_layer_forward.6} parent=0 // pred_fallthru
    _
  %v15 = vld [vmem:[%s0] sm:$0xf]
  %v16 = vld [vmem:[%s0 + $0x4] sm:$0xf]
  %v17 = vld [vmem:[%s0 + $0x8] sm:$0xf]
  %v18 = vld [vmem:[%s0 + $0xc] sm:$0xf]
  %v19 = vld [vmem:[%s0 + $0x10] sm:$0xf]
  %v20 = vld [vmem:[%s0 + $0x14] sm:$0xf]
  %v21 = vld [vmem:[%s0 + $0x18] sm:$0xf]
  %v22 = vld [vmem:[%s0 + $0x1c] sm:$0xf]
  %v23 = vld [vmem:[%s0 + $0x20] sm:$0xf]
  %v24 = vld [vmem:[%s0 + $0x24] sm:$0xf]
  %v25 = vld [vmem:[%s0 + $0x28] sm:$0xf]
  %v26 = vld [vmem:[%s0 + $0x2c] sm:$0xf]
  %v27 = vld [vmem:[%s0 + $0x30] sm:$0xf]
  %v28 = vld [vmem:[%s0 + $0x34] sm:$0xf]
  %v29 = vld [vmem:[%s0 + $0x38] sm:$0xf]
  %v30 = vld [vmem:[%s0 + $0x3c] sm:$0xf]
  %v31 = vld [vmem:[%s1] sm:$0xf]
  %v32 = vld [vmem:[%s1 + $0x4] sm:$0xf]
  %v33 = vld [vmem:[%s1 + $0x8] sm:$0xf]
  %v34 = vld [vmem:[%s1 + $0xc] sm:$0xf]
  %v35 = vld [vmem:[%s1 + $0x10] sm:$0xf]
  %v36 = vld [vmem:[%s1 + $0x14] sm:$0xf]
  %v37 = vld [vmem:[%s1 + $0x18] sm:$0xf]
  %v38 = vld [vmem:[%s1 + $0x1c] sm:$0xf]
  %v39 = vld [vmem:[%s1 + $0x20] sm:$0xf]
  %v40 = vld [vmem:[%s2] sm:$0x1]
  %v42 = vlaneseq
  %v43 = vshrl.u32 %v42, 7
  %v44 = vsub.s32 0, %v43
  %v45 = vrot.slane %v40, %v44
  %v63 = vunpack.c.l.b16 %v15
  %v64 = vunpack.c.l.b16 %v16
  %v65 = vunpack.c.l.b16 %v17
  %v66 = vunpack.c.l.b16 %v18
  %v67 = vunpack.c.l.b16 %v19
  %v68 = vunpack.c.l.b16 %v20
  %v69 = vunpack.c.l.b16 %v21
  %v70 = vunpack.c.l.b16 %v22
  %v71 = vunpack.c.l.b16 %v23
  %v72 = vunpack.c.l.b16 %v24
  %v73 = vunpack.c.l.b16 %v25
  %v74 = vunpack.c.l.b16 %v26
  %v75 = vunpack.c.l.b16 %v27
  %v76 = vunpack.c.l.b16 %v28
  %v77 = vunpack.c.l.b16 %v29
  %v78 = vunpack.c.l.b16 %v30
  %v79 = vpack.c.b16 %v64, %v63
  %v80 = vpack.c.b16 %v66, %v65
  %v81 = vpack.c.b16 %v68, %v67
  %v82 = vpack.c.b16 %v70, %v69
  %v83 = vpack.c.b16 %v72, %v71
  %v84 = vpack.c.b16 %v74, %v73
  %v85 = vpack.c.b16 %v76, %v75
  %v86 = vpack.c.b16 %v78, %v77
  %v96 = vunpack.c.l.b16 %v31
  %v97 = vunpack.c.l.b16 %v32
  %v98 = vunpack.c.l.b16 %v33
  %v99 = vunpack.c.l.b16 %v34
  %v100 = vunpack.c.l.b16 %v35
  %v101 = vunpack.c.l.b16 %v36
  %v102 = vunpack.c.l.b16 %v37
  %v103 = vunpack.c.l.b16 %v38
  %v104 = vunpack.c.l.b16 %v39
  %v105 = vpack.c.b16 %v97, %v96
  %v106 = vpack.c.b16 %v99, %v98
  %v107 = vpack.c.b16 %v101, %v100
  %v108 = vpack.c.b16 %v103, %v102
  %v109 = vpack.c.b16 %v104, %v104
  %vm114 = vcmask 588800
  %v116 = vsel %vm114, %v79, 0
  %v119 = vsel %vm114, %v80, 0
  %v122 = vsel %vm114, %v81, 0
  %v125 = vsel %vm114, %v82, 0
  %v128 = vsel %vm114, %v83, 0
  %v131 = vsel %vm114, %v84, 0
  %v134 = vsel %vm114, %v85, 0
  %v137 = vsel %vm114, %v86, 0
  %vm139 = vcmask 1043456
  %v141 = vsel %vm139, %v109, 0
  %143 = vmatprep.subr.bf16.mxu0 0
  %144 = vmatpush1.bf16.msra.mxu0 %v105
  %145 = vmatprep.subr.bf16.mxu0 0
  %146 = vmatpush1.bf16.msra.mxu0 %v106
  %147 = vmatprep.subr.bf16.mxu0 0
  %148 = vmatpush1.bf16.msra.mxu0 %v107
  %149 = vmatprep.subr.bf16.mxu0 0
  %150 = vmatpush1.bf16.msra.mxu0 %v108
  %151 = vmatprep.subr.bf16.mxu0 0
  %152 = vmatpush1.bf16.msra.mxu0 %v141
  %153 = vmatprep.subr.bf16.mxu0 0
  %154 = vmatpush1.bf16.msra.mxu0 0
  %155 = vmatprep.subr.bf16.mxu0 0
  %156 = vmatpush1.bf16.msra.mxu0 0
  %157 = vmatprep.subr.bf16.mxu0 0
  %158 = vmatpush1.bf16.msra.mxu0 0
  %159 = vmatprep.subr.bf16.mxu0 0
  %160 = vmatpush1.bf16.msra.mxu0 0
  %161 = vmatprep.subr.bf16.mxu0 0
  %162 = vmatpush1.bf16.msra.mxu0 0
  %163 = vmatprep.subr.bf16.mxu0 0
  %164 = vmatpush1.bf16.msra.mxu0 0
  %165 = vmatprep.subr.bf16.mxu0 0
  %166 = vmatpush1.bf16.msra.mxu0 0
  %167 = vmatprep.subr.bf16.mxu0 0
  %168 = vmatpush1.bf16.msra.mxu0 0
  %169 = vmatprep.subr.bf16.mxu0 0
  %170 = vmatpush1.bf16.msra.mxu0 0
  %171 = vmatprep.subr.bf16.mxu0 0
  %172 = vmatpush1.bf16.msra.mxu0 0
  %173 = vmatprep.subr.bf16.mxu0 0
  %174 = vmatpush1.bf16.msra.mxu0 0
  %175 = vmatprep.mubr.bf16.mxu0 0
  %176 = vmatmul.mubr.bf16.gmra.mrb[0].mxu0 %v116
  %v177 = vpop.f32.mrb[0].mxu0
  %v178 = vadd.f32 %v45, %v177
  %v179 = vpop.f32.mrb[0].mxu0
  %v180 = vpop.f32.mrb[0].mxu0
  %v181 = vadd.f32 %v45, %v180
  %v182 = vpop.f32.mrb[0].mxu0
  %183 = vmatprep.mubr.bf16.mxu0 0
  %184 = vmatmul.mubr.bf16.gmra.mrb[0].mxu0 %v119
  %v185 = vpop.f32.mrb[0].mxu0
  %v186 = vadd.f32 %v45, %v185
  %v187 = vpop.f32.mrb[0].mxu0
  %v188 = vpop.f32.mrb[0].mxu0
  %v189 = vadd.f32 %v45, %v188
  %v190 = vpop.f32.mrb[0].mxu0
  %191 = vmatprep.mubr.bf16.mxu0 0
  %192 = vmatmul.mubr.bf16.gmra.mrb[0].mxu0 %v122
  %v193 = vpop.f32.mrb[0].mxu0
  %v194 = vadd.f32 %v45, %v193
  %v195 = vpop.f32.mrb[0].mxu0
  %v196 = vpop.f32.mrb[0].mxu0
  %v197 = vadd.f32 %v45, %v196
  %v198 = vpop.f32.mrb[0].mxu0
  %199 = vmatprep.mubr.bf16.mxu0 0
  %200 = vmatmul.mubr.bf16.gmra.mrb[0].mxu0 %v125
  %v201 = vpop.f32.mrb[0].mxu0
  %v202 = vadd.f32 %v45, %v201
  %v203 = vpop.f32.mrb[0].mxu0
  %v204 = vpop.f32.mrb[0].mxu0
  %v205 = vadd.f32 %v45, %v204
  %v206 = vpop.f32.mrb[0].mxu0
  %207 = vmatprep.mubr.bf16.mxu0 0
  %208 = vmatmul.mubr.bf16.gmra.mrb[0].mxu0 %v128
  %v209 = vpop.f32.mrb[0].mxu0
  %v210 = vadd.f32 %v45, %v209
  %v211 = vpop.f32.mrb[0].mxu0
  %v212 = vpop.f32.mrb[0].mxu0
  %v213 = vadd.f32 %v45, %v212
  %v214 = vpop.f32.mrb[0].mxu0
  %215 = vmatprep.mubr.bf16.mxu0 0
  %216 = vmatmul.mubr.bf16.gmra.mrb[0].mxu0 %v131
  %v217 = vpop.f32.mrb[0].mxu0
  %v218 = vadd.f32 %v45, %v217
  %v219 = vpop.f32.mrb[0].mxu0
  %v220 = vpop.f32.mrb[0].mxu0
  %v221 = vadd.f32 %v45, %v220
  %v222 = vpop.f32.mrb[0].mxu0
  %223 = vmatprep.mubr.bf16.mxu0 0
  %224 = vmatmul.mubr.bf16.gmra.mrb[0].mxu0 %v134
  %v225 = vpop.f32.mrb[0].mxu0
  %v226 = vadd.f32 %v45, %v225
  %v227 = vpop.f32.mrb[0].mxu0
  %v228 = vpop.f32.mrb[0].mxu0
  %v229 = vadd.f32 %v45, %v228
  %v230 = vpop.f32.mrb[0].mxu0
  %231 = vmatprep.mubr.bf16.mxu0 0
  %232 = vmatmul.mubr.bf16.gmra.mrb[0].mxu0 %v137
  %v233 = vpop.f32.mrb[0].mxu0
  %v234 = vadd.f32 %v45, %v233
  %v235 = vpop.f32.mrb[0].mxu0
  %v236 = vpop.f32.mrb[0].mxu0
  %v237 = vadd.f32 %v45, %v236
  %v238 = vpop.f32.mrb[0].mxu0
  %239 = vdwg.mxu0
  %v240 = vmax.f32 %v178, 0.0
  %v241 = vmax.f32 %v181, 0.0
  %v242 = vmax.f32 %v186, 0.0
  %v243 = vmax.f32 %v189, 0.0
  %v244 = vmax.f32 %v194, 0.0
  %v245 = vmax.f32 %v197, 0.0
  %v246 = vmax.f32 %v202, 0.0
  %v247 = vmax.f32 %v205, 0.0
  %v248 = vmax.f32 %v210, 0.0
  %v249 = vmax.f32 %v213, 0.0
  %v250 = vmax.f32 %v218, 0.0
  %v251 = vmax.f32 %v221, 0.0
  %v252 = vmax.f32 %v226, 0.0
  %v253 = vmax.f32 %v229, 0.0
  %v254 = vmax.f32 %v234, 0.0
  %v255 = vmax.f32 %v237, 0.0
  %v256 = vpack.c.bf16 %v241, %v240
  %v257 = vpack.c.bf16 %v243, %v242
  %v258 = vpack.c.bf16 %v245, %v244
  %v259 = vpack.c.bf16 %v247, %v246
  %v260 = vpack.c.bf16 %v249, %v248
  %v261 = vpack.c.bf16 %v251, %v250
  %v262 = vpack.c.bf16 %v253, %v252
  %v263 = vpack.c.bf16 %v255, %v254
  %v272 = vunpack.c.l.b16 %v256
  %v273 = vunpack.c.h.b16 %v256
  %v274 = vunpack.c.l.b16 %v257
  %v275 = vunpack.c.h.b16 %v257
  %v276 = vunpack.c.l.b16 %v258
  %v277 = vunpack.c.h.b16 %v258
  %v278 = vunpack.c.l.b16 %v259
  %v279 = vunpack.c.h.b16 %v259
  %v280 = vunpack.c.l.b16 %v260
  %v281 = vunpack.c.h.b16 %v260
  %v282 = vunpack.c.l.b16 %v261
  %v283 = vunpack.c.h.b16 %v261
  %v284 = vunpack.c.l.b16 %v262
  %v285 = vunpack.c.h.b16 %v262
  %v286 = vunpack.c.l.b16 %v263
  %v287 = vunpack.c.h.b16 %v263
  %v288 = vpack.c.b16 %v272, %v272
  %v289 = vpack.c.b16 %v273, %v273
  %v290 = vpack.c.b16 %v274, %v274
  %v291 = vpack.c.b16 %v275, %v275
  %v292 = vpack.c.b16 %v276, %v276
  %v293 = vpack.c.b16 %v277, %v277
  %v294 = vpack.c.b16 %v278, %v278
  %v295 = vpack.c.b16 %v279, %v279
  %v296 = vpack.c.b16 %v280, %v280
  %v297 = vpack.c.b16 %v281, %v281
  %v298 = vpack.c.b16 %v282, %v282
  %v299 = vpack.c.b16 %v283, %v283
  %v300 = vpack.c.b16 %v284, %v284
  %v301 = vpack.c.b16 %v285, %v285
  %v302 = vpack.c.b16 %v286, %v286
  %v303 = vpack.c.b16 %v287, %v287
  %320 = vst [vmem:[%s3] sm:$0xf] %v288
  %321 = vst [vmem:[%s3 + $0x4] sm:$0xf] %v289
  %322 = vst [vmem:[%s3 + $0x8] sm:$0xf] %v290
  %323 = vst [vmem:[%s3 + $0xc] sm:$0xf] %v291
  %324 = vst [vmem:[%s3 + $0x10] sm:$0xf] %v292
  %325 = vst [vmem:[%s3 + $0x14] sm:$0xf] %v293
  %326 = vst [vmem:[%s3 + $0x18] sm:$0xf] %v294
  %327 = vst [vmem:[%s3 + $0x1c] sm:$0xf] %v295
  %328 = vst [vmem:[%s3 + $0x20] sm:$0xf] %v296
  %329 = vst [vmem:[%s3 + $0x24] sm:$0xf] %v297
  %330 = vst [vmem:[%s3 + $0x28] sm:$0xf] %v298
  %331 = vst [vmem:[%s3 + $0x2c] sm:$0xf] %v299
  %332 = vst [vmem:[%s3 + $0x30] sm:$0xf] %v300
  %333 = vst [vmem:[%s3 + $0x34] sm:$0xf] %v301
  %334 = vst [vmem:[%s3 + $0x38] sm:$0xf] %v302
  %335 = vst [vmem:[%s3 + $0x3c] sm:$0xf] %v303
  // Predicated region
  $region14: #{resnet_layer_forward.6} parent=0 // pred_check
    _
  $region15: #{resnet_layer_forward.6} parent=0 // pred_check_branch
    %337 = sbr.rel (0) target = $region17
  $region16: #{resnet_layer_forward.6} parent=0 // pred_region
    _
  $region17: #{resnet_layer_forward.6} parent=0 // pred_fallthru
    _
  // Predicated region
  $region18: #{resnet_layer_forward.6} parent=0 // pred_check
    _
  $region19: #{resnet_layer_forward.6} parent=0 // pred_check_branch
    %339 = sbr.rel (0) target = $region21
  $region20: #{resnet_layer_forward.6} parent=0 // pred_region
    _
  $region21: #{resnet_layer_forward.6} parent=0 // pred_fallthru
    _

// kernel: resnet_layer_forward.5
$region0: #{resnet_layer_forward.5}
  #allocation0 [shape = 'u32[]', space=smem, size = 0x4, offset = 0x4, fixed_abs, tag = 'smem constant byte address 0x4 - core index']
  #allocation1 [shape = 'u32[144,128]{1,0:T(1,128)}', space=vmem, size = 0x12000, scoped, tag = 'internal scratch']
  %s0 = inlined_call_operand.vmem [shape: bf16[128,72], index: 0, kind: input, shape index: {}]
  %s1 = inlined_call_operand.vmem [shape: bf16[72,128], index: 1, kind: input, shape index: {}]
  %s2 = inlined_call_operand.vmem [shape: f32[1,128], index: 2, kind: input, shape index: {}]
  %s3 = inlined_call_operand.vmem [shape: bf16[128,4], index: 3, kind: input, shape index: {}]
  %s4 = inlined_call_operand.vmem [shape: bf16[4,128], index: 4, kind: input, shape index: {}]
  %s5 = inlined_call_operand.vmem [shape: f32[1,128], index: 5, kind: input, shape index: {}]
  %s6 = inlined_call_operand.vmem [shape: bf16[128,128], index: 6, kind: output, shape index: {}]
  %s7 = sld [smem:[#allocation0]]
  $region34: #{resnet_layer_forward.5} parent=0
    _
  %s9 = ssub.s32 1, %s7
  %s10 = scalar_select 0, %s9, %s7
  // Predicated region
  $region2: #{resnet_layer_forward.5} parent=0 // pred_check
    _
  $region3: #{resnet_layer_forward.5} parent=0 // pred_check_branch
    %12 = sbr.rel (0) target = $region5
  $region4: #{resnet_layer_forward.5} parent=0 // pred_region
    _
  $region5: #{resnet_layer_forward.5} parent=0 // pred_fallthru
    _
  // Predicated region
  $region6: #{resnet_layer_forward.5} parent=0 // pred_check
    _
  $region7: #{resnet_layer_forward.5} parent=0 // pred_check_branch
    %14 = sbr.rel (0) target = $region9
  $region8: #{resnet_layer_forward.5} parent=0 // pred_region
    _
  $region9: #{resnet_layer_forward.5} parent=0 // pred_fallthru
    _
  // Predicated region
  $region10: #{resnet_layer_forward.5} parent=0 // pred_check
    _
  $region11: #{resnet_layer_forward.5} parent=0 // pred_check_branch
    %16 = sbr.rel (0) target = $region13
  $region12: #{resnet_layer_forward.5} parent=0 // pred_region
    _
  $region13: #{resnet_layer_forward.5} parent=0 // pred_fallthru
    _
  // Predicated region
  $region14: #{resnet_layer_forward.5} parent=0 // pred_check
    _
  $region15: #{resnet_layer_forward.5} parent=0 // pred_check_branch
    %18 = sbr.rel (0) target = $region17
  $region16: #{resnet_layer_forward.5} parent=0 // pred_region
    _
  $region17: #{resnet_layer_forward.5} parent=0 // pred_fallthru
    _
  // Predicated region
  $region18: #{resnet_layer_forward.5} parent=0 // pred_check
    _
  $region19: #{resnet_layer_forward.5} parent=0 // pred_check_branch
    %20 = sbr.rel (0) target = $region21
  $region20: #{resnet_layer_forward.5} parent=0 // pred_region
    _
  $region21: #{resnet_layer_forward.5} parent=0 // pred_fallthru
    _
  // Predicated region
  $region22: #{resnet_layer_forward.5} parent=0 // pred_check
    _
  $region23: #{resnet_layer_forward.5} parent=0 // pred_check_branch
    %22 = sbr.rel (0) target = $region25
  $region24: #{resnet_layer_forward.5} parent=0 // pred_region
    _
  $region25: #{resnet_layer_forward.5} parent=0 // pred_fallthru
    _
  %v24 = vld [vmem:[%s0] sm:$0xf]
  %v25 = vld [vmem:[%s0 + $0x4] sm:$0xf]
  %v26 = vld [vmem:[%s0 + $0x8] sm:$0xf]
  %v27 = vld [vmem:[%s0 + $0xc] sm:$0xf]
  %v28 = vld [vmem:[%s0 + $0x10] sm:$0xf]
  %v29 = vld [vmem:[%s0 + $0x14] sm:$0xf]
  %v30 = vld [vmem:[%s0 + $0x18] sm:$0xf]
  %v31 = vld [vmem:[%s0 + $0x1c] sm:$0xf]
  %v32 = vld [vmem:[%s0 + $0x20] sm:$0xf]
  %v33 = vld [vmem:[%s0 + $0x24] sm:$0xf]
  %v34 = vld [vmem:[%s0 + $0x28] sm:$0xf]
  %v35 = vld [vmem:[%s0 + $0x2c] sm:$0xf]
  %v36 = vld [vmem:[%s0 + $0x30] sm:$0xf]
  %v37 = vld [vmem:[%s0 + $0x34] sm:$0xf]
  %v38 = vld [vmem:[%s0 + $0x38] sm:$0xf]
  %v39 = vld [vmem:[%s0 + $0x3c] sm:$0xf]
  %v40 = vld [vmem:[%s1] sm:$0xf]
  %v41 = vld [vmem:[%s1 + $0x4] sm:$0xf]
  %v42 = vld [vmem:[%s1 + $0x8] sm:$0xf]
  %v43 = vld [vmem:[%s1 + $0xc] sm:$0xf]
  %v44 = vld [vmem:[%s1 + $0x10] sm:$0xf]
  %v45 = vld [vmem:[%s1 + $0x14] sm:$0xf]
  %v46 = vld [vmem:[%s1 + $0x18] sm:$0xf]
  %v47 = vld [vmem:[%s1 + $0x1c] sm:$0xf]
  %v48 = vld [vmem:[%s1 + $0x20] sm:$0xf]
  %v49 = vld [vmem:[%s2] sm:$0x1]
  %v51 = vlaneseq
  %v52 = vshrl.u32 %v51, 7
  %v53 = vsub.s32 0, %v52
  %v54 = vrot.slane %v49, %v53
  %v72 = vunpack.c.l.b16 %v24
  %v73 = vunpack.c.l.b16 %v25
  %v74 = vunpack.c.l.b16 %v26
  %v75 = vunpack.c.l.b16 %v27
  %v76 = vunpack.c.l.b16 %v28
  %v77 = vunpack.c.l.b16 %v29
  %v78 = vunpack.c.l.b16 %v30
  %v79 = vunpack.c.l.b16 %v31
  %v80 = vunpack.c.l.b16 %v32
  %v81 = vunpack.c.l.b16 %v33
  %v82 = vunpack.c.l.b16 %v34
  %v83 = vunpack.c.l.b16 %v35
  %v84 = vunpack.c.l.b16 %v36
  %v85 = vunpack.c.l.b16 %v37
  %v86 = vunpack.c.l.b16 %v38
  %v87 = vunpack.c.l.b16 %v39
  %v88 = vpack.c.b16 %v73, %v72
  %v89 = vpack.c.b16 %v75, %v74
  %v90 = vpack.c.b16 %v77, %v76
  %v91 = vpack.c.b16 %v79, %v78
  %v92 = vpack.c.b16 %v81, %v80
  %v93 = vpack.c.b16 %v83, %v82
  %v94 = vpack.c.b16 %v85, %v84
  %v95 = vpack.c.b16 %v87, %v86
  %v105 = vunpack.c.l.b16 %v40
  %v106 = vunpack.c.l.b16 %v41
  %v107 = vunpack.c.l.b16 %v42
  %v108 = vunpack.c.l.b16 %v43
  %v109 = vunpack.c.l.b16 %v44
  %v110 = vunpack.c.l.b16 %v45
  %v111 = vunpack.c.l.b16 %v46
  %v112 = vunpack.c.l.b16 %v47
  %v113 = vunpack.c.l.b16 %v48
  %v114 = vpack.c.b16 %v106, %v105
  %v115 = vpack.c.b16 %v108, %v107
  %v116 = vpack.c.b16 %v110, %v109
  %v117 = vpack.c.b16 %v112, %v111
  %v118 = vpack.c.b16 %v113, %v113
  %vm123 = vcmask 588800
  %v125 = vsel %vm123, %v88, 0
  %v128 = vsel %vm123, %v89, 0
  %v131 = vsel %vm123, %v90, 0
  %v134 = vsel %vm123, %v91, 0
  %v137 = vsel %vm123, %v92, 0
  %v140 = vsel %vm123, %v93, 0
  %v143 = vsel %vm123, %v94, 0
  %v146 = vsel %vm123, %v95, 0
  %vm148 = vcmask 1043456
  %v150 = vsel %vm148, %v118, 0
  %152 = vmatprep.subr.bf16.mxu0 0
  %153 = vmatpush1.bf16.msra.mxu0 %v114
  %154 = vmatprep.subr.bf16.mxu0 0
  %155 = vmatpush1.bf16.msra.mxu0 %v115
  %156 = vmatprep.subr.bf16.mxu0 0
  %157 = vmatpush1.bf16.msra.mxu0 %v116
  %158 = vmatprep.subr.bf16.mxu0 0
  %159 = vmatpush1.bf16.msra.mxu0 %v117
  %160 = vmatprep.subr.bf16.mxu0 0
  %161 = vmatpush1.bf16.msra.mxu0 %v150
  %162 = vmatprep.subr.bf16.mxu0 0
  %163 = vmatpush1.bf16.msra.mxu0 0
  %164 = vmatprep.subr.bf16.mxu0 0
  %165 = vmatpush1.bf16.msra.mxu0 0
  %166 = vmatprep.subr.bf16.mxu0 0
  %167 = vmatpush1.bf16.msra.mxu0 0
  %168 = vmatprep.subr.bf16.mxu0 0
  %169 = vmatpush1.bf16.msra.mxu0 0
  %170 = vmatprep.subr.bf16.mxu0 0
  %171 = vmatpush1.bf16.msra.mxu0 0
  %172 = vmatprep.subr.bf16.mxu0 0
  %173 = vmatpush1.bf16.msra.mxu0 0
  %174 = vmatprep.subr.bf16.mxu0 0
  %175 = vmatpush1.bf16.msra.mxu0 0
  %176 = vmatprep.subr.bf16.mxu0 0
  %177 = vmatpush1.bf16.msra.mxu0 0
  %178 = vmatprep.subr.bf16.mxu0 0
  %179 = vmatpush1.bf16.msra.mxu0 0
  %180 = vmatprep.subr.bf16.mxu0 0
  %181 = vmatpush1.bf16.msra.mxu0 0
  %182 = vmatprep.subr.bf16.mxu0 0
  %183 = vmatpush1.bf16.msra.mxu0 0
  %184 = vmatprep.mubr.bf16.mxu0 0
  %185 = vmatmul.mubr.bf16.gmra.mrb[0].mxu0 %v125
  %v186 = vpop.f32.mrb[0].mxu0
  %v187 = vadd.f32 %v54, %v186
  %v188 = vpop.f32.mrb[0].mxu0
  %v189 = vpop.f32.mrb[0].mxu0
  %v190 = vadd.f32 %v54, %v189
  %v191 = vpop.f32.mrb[0].mxu0
  %192 = vmatprep.mubr.bf16.mxu0 0
  %193 = vmatmul.mubr.bf16.gmra.mrb[0].mxu0 %v128
  %v194 = vpop.f32.mrb[0].mxu0
  %v195 = vadd.f32 %v54, %v194
  %v196 = vpop.f32.mrb[0].mxu0
  %v197 = vpop.f32.mrb[0].mxu0
  %v198 = vadd.f32 %v54, %v197
  %v199 = vpop.f32.mrb[0].mxu0
  %200 = vmatprep.mubr.bf16.mxu0 0
  %201 = vmatmul.mubr.bf16.gmra.mrb[0].mxu0 %v131
  %v202 = vpop.f32.mrb[0].mxu0
  %v203 = vadd.f32 %v54, %v202
  %v204 = vpop.f32.mrb[0].mxu0
  %v205 = vpop.f32.mrb[0].mxu0
  %v206 = vadd.f32 %v54, %v205
  %v207 = vpop.f32.mrb[0].mxu0
  %208 = vmatprep.mubr.bf16.mxu0 0
  %209 = vmatmul.mubr.bf16.gmra.mrb[0].mxu0 %v134
  %v210 = vpop.f32.mrb[0].mxu0
  %v211 = vadd.f32 %v54, %v210
  %v212 = vpop.f32.mrb[0].mxu0
  %v213 = vpop.f32.mrb[0].mxu0
  %v214 = vadd.f32 %v54, %v213
  %v215 = vpop.f32.mrb[0].mxu0
  %216 = vmatprep.mubr.bf16.mxu0 0
  %217 = vmatmul.mubr.bf16.gmra.mrb[0].mxu0 %v137
  %v218 = vpop.f32.mrb[0].mxu0
  %v219 = vadd.f32 %v54, %v218
  %v220 = vpop.f32.mrb[0].mxu0
  %v221 = vpop.f32.mrb[0].mxu0
  %v222 = vadd.f32 %v54, %v221
  %v223 = vpop.f32.mrb[0].mxu0
  %224 = vmatprep.mubr.bf16.mxu0 0
  %225 = vmatmul.mubr.bf16.gmra.mrb[0].mxu0 %v140
  %v226 = vpop.f32.mrb[0].mxu0
  %v227 = vadd.f32 %v54, %v226
  %v228 = vpop.f32.mrb[0].mxu0
  %v229 = vpop.f32.mrb[0].mxu0
  %v230 = vadd.f32 %v54, %v229
  %v231 = vpop.f32.mrb[0].mxu0
  %232 = vmatprep.mubr.bf16.mxu0 0
  %233 = vmatmul.mubr.bf16.gmra.mrb[0].mxu0 %v143
  %v234 = vpop.f32.mrb[0].mxu0
  %v235 = vadd.f32 %v54, %v234
  %v236 = vpop.f32.mrb[0].mxu0
  %v237 = vpop.f32.mrb[0].mxu0
  %v238 = vadd.f32 %v54, %v237
  %v239 = vpop.f32.mrb[0].mxu0
  %240 = vmatprep.mubr.bf16.mxu0 0
  %241 = vmatmul.mubr.bf16.gmra.mrb[0].mxu0 %v146
  %v242 = vpop.f32.mrb[0].mxu0
  %v243 = vadd.f32 %v54, %v242
  %v244 = vpop.f32.mrb[0].mxu0
  %v245 = vpop.f32.mrb[0].mxu0
  %v246 = vadd.f32 %v54, %v245
  %v247 = vpop.f32.mrb[0].mxu0
  %248 = vdwg.mxu0
  %v249 = vld [vmem:[%s3] sm:$0xf]
  %v250 = vld [vmem:[%s3 + $0x4] sm:$0xf]
  %v251 = vld [vmem:[%s3 + $0x8] sm:$0xf]
  %v252 = vld [vmem:[%s3 + $0xc] sm:$0xf]
  %v253 = vld [vmem:[%s3 + $0x10] sm:$0xf]
  %v254 = vld [vmem:[%s3 + $0x14] sm:$0xf]
  %v255 = vld [vmem:[%s3 + $0x18] sm:$0xf]
  %v256 = vld [vmem:[%s3 + $0x1c] sm:$0xf]
  %v257 = vld [vmem:[%s3 + $0x20] sm:$0xf]
  %v258 = vld [vmem:[%s3 + $0x24] sm:$0xf]
  %v259 = vld [vmem:[%s3 + $0x28] sm:$0xf]
  %v260 = vld [vmem:[%s3 + $0x2c] sm:$0xf]
  %v261 = vld [vmem:[%s3 + $0x30] sm:$0xf]
  %v262 = vld [vmem:[%s3 + $0x34] sm:$0xf]
  %v263 = vld [vmem:[%s3 + $0x38] sm:$0xf]
  %v264 = vld [vmem:[%s3 + $0x3c] sm:$0xf]
  %v265 = vld [vmem:[%s4] sm:$0x3]
  %v282 = vunpack.c.l.b16 %v249
  %v283 = vunpack.c.l.b16 %v250
  %v284 = vunpack.c.l.b16 %v251
  %v285 = vunpack.c.l.b16 %v252
  %v286 = vunpack.c.l.b16 %v253
  %v287 = vunpack.c.l.b16 %v254
  %v288 = vunpack.c.l.b16 %v255
  %v289 = vunpack.c.l.b16 %v256
  %v290 = vunpack.c.l.b16 %v257
  %v291 = vunpack.c.l.b16 %v258
  %v292 = vunpack.c.l.b16 %v259
  %v293 = vunpack.c.l.b16 %v260
  %v294 = vunpack.c.l.b16 %v261
  %v295 = vunpack.c.l.b16 %v262
  %v296 = vunpack.c.l.b16 %v263
  %v297 = vunpack.c.l.b16 %v264
  %v298 = vpack.c.b16 %v283, %v282
  %v299 = vpack.c.b16 %v285, %v284
  %v300 = vpack.c.b16 %v287, %v286
  %v301 = vpack.c.b16 %v289, %v288
  %v302 = vpack.c.b16 %v291, %v290
  %v303 = vpack.c.b16 %v293, %v292
  %v304 = vpack.c.b16 %v295, %v294
  %v305 = vpack.c.b16 %v297, %v296
  %vm306 = vcmask 31744
  %v308 = vsel %vm306, %v298, 0
  %v311 = vsel %vm306, %v299, 0
  %v314 = vsel %vm306, %v300, 0
  %v317 = vsel %vm306, %v301, 0
  %v320 = vsel %vm306, %v302, 0
  %v323 = vsel %vm306, %v303, 0
  %v326 = vsel %vm306, %v304, 0
  %v329 = vsel %vm306, %v305, 0
  %vm331 = vcmask 1041408
  %v333 = vsel %vm331, %v265, 0
  %335 = vmatprep.subr.bf16.mxu0 0
  %336 = vmatpush1.bf16.msra.mxu0 %v333
  %337 = vmatprep.subr.bf16.mxu0 0
  %338 = vmatpush1.bf16.msra.mxu0 0
  %339 = vmatprep.subr.bf16.mxu0 0
  %340 = vmatpush1.bf16.msra.mxu0 0
  %341 = vmatprep.subr.bf16.mxu0 0
  %342 = vmatpush1.bf16.msra.mxu0 0
  %343 = vmatprep.subr.bf16.mxu0 0
  %344 = vmatpush1.bf16.msra.mxu0 0
  %345 = vmatprep.subr.bf16.mxu0 0
  %346 = vmatpush1.bf16.msra.mxu0 0
  %347 = vmatprep.subr.bf16.mxu0 0
  %348 = vmatpush1.bf16.msra.mxu0 0
  %349 = vmatprep.subr.bf16.mxu0 0
  %350 = vmatpush1.bf16.msra.mxu0 0
  %351 = vmatprep.subr.bf16.mxu0 0
  %352 = vmatpush1.bf16.msra.mxu0 0
  %353 = vmatprep.subr.bf16.mxu0 0
  %354 = vmatpush1.bf16.msra.mxu0 0
  %355 = vmatprep.subr.bf16.mxu0 0
  %356 = vmatpush1.bf16.msra.mxu0 0
  %357 = vmatprep.subr.bf16.mxu0 0
  %358 = vmatpush1.bf16.msra.mxu0 0
  %359 = vmatprep.subr.bf16.mxu0 0
  %360 = vmatpush1.bf16.msra.mxu0 0
  %361 = vmatprep.subr.bf16.mxu0 0
  %362 = vmatpush1.bf16.msra.mxu0 0
  %363 = vmatprep.subr.bf16.mxu0 0
  %364 = vmatpush1.bf16.msra.mxu0 0
  %365 = vmatprep.subr.bf16.mxu0 0
  %366 = vmatpush1.bf16.msra.mxu0 0
  %367 = vmatprep.mubr.bf16.mxu0 0
  %368 = vmatmul.mubr.bf16.gmra.mrb[0].mxu0 %v308
  %v369 = vpop.f32.mrb[0].mxu0
  %v370 = vadd.f32 0.0, %v369
  %v371 = vpop.f32.mrb[0].mxu0
  %v372 = vpop.f32.mrb[0].mxu0
  %v373 = vadd.f32 0.0, %v372
  %v374 = vpop.f32.mrb[0].mxu0
  %375 = vmatprep.mubr.bf16.mxu0 0
  %376 = vmatmul.mubr.bf16.gmra.mrb[0].mxu0 %v311
  %v377 = vpop.f32.mrb[0].mxu0
  %v378 = vadd.f32 0.0, %v377
  %v379 = vpop.f32.mrb[0].mxu0
  %v380 = vpop.f32.mrb[0].mxu0
  %v381 = vadd.f32 0.0, %v380
  %v382 = vpop.f32.mrb[0].mxu0
  %383 = vmatprep.mubr.bf16.mxu0 0
  %384 = vmatmul.mubr.bf16.gmra.mrb[0].mxu0 %v314
  %v385 = vpop.f32.mrb[0].mxu0
  %v386 = vadd.f32 0.0, %v385
  %v387 = vpop.f32.mrb[0].mxu0
  %v388 = vpop.f32.mrb[0].mxu0
  %v389 = vadd.f32 0.0, %v388
  %v390 = vpop.f32.mrb[0].mxu0
  %391 = vmatprep.mubr.bf16.mxu0 0
  %392 = vmatmul.mubr.bf16.gmra.mrb[0].mxu0 %v317
  %v393 = vpop.f32.mrb[0].mxu0
  %v394 = vadd.f32 0.0, %v393
  %v395 = vpop.f32.mrb[0].mxu0
  %v396 = vpop.f32.mrb[0].mxu0
  %v397 = vadd.f32 0.0, %v396
  %v398 = vpop.f32.mrb[0].mxu0
  %399 = vmatprep.mubr.bf16.mxu0 0
  %400 = vmatmul.mubr.bf16.gmra.mrb[0].mxu0 %v320
  %v401 = vpop.f32.mrb[0].mxu0
  %v402 = vadd.f32 0.0, %v401
  %v403 = vpop.f32.mrb[0].mxu0
  %v404 = vpop.f32.mrb[0].mxu0
  %v405 = vadd.f32 0.0, %v404
  %v406 = vpop.f32.mrb[0].mxu0
  %407 = vmatprep.mubr.bf16.mxu0 0
  %408 = vmatmul.mubr.bf16.gmra.mrb[0].mxu0 %v323
  %v409 = vpop.f32.mrb[0].mxu0
  %v410 = vadd.f32 0.0, %v409
  %v411 = vpop.f32.mrb[0].mxu0
  %v412 = vpop.f32.mrb[0].mxu0
  %v413 = vadd.f32 0.0, %v412
  %v414 = vpop.f32.mrb[0].mxu0
  %415 = vmatprep.mubr.bf16.mxu0 0
  %416 = vmatmul.mubr.bf16.gmra.mrb[0].mxu0 %v326
  %v417 = vpop.f32.mrb[0].mxu0
  %v418 = vadd.f32 0.0, %v417
  %v419 = vpop.f32.mrb[0].mxu0
  %v420 = vpop.f32.mrb[0].mxu0
  %v421 = vadd.f32 0.0, %v420
  %v422 = vpop.f32.mrb[0].mxu0
  %423 = vmatprep.mubr.bf16.mxu0 0
  %424 = vmatmul.mubr.bf16.gmra.mrb[0].mxu0 %v329
  %v425 = vpop.f32.mrb[0].mxu0
  %v426 = vadd.f32 0.0, %v425
  %v427 = vpop.f32.mrb[0].mxu0
  %v428 = vpop.f32.mrb[0].mxu0
  %v429 = vadd.f32 0.0, %v428
  %v430 = vpop.f32.mrb[0].mxu0
  %431 = vdwg.mxu0
  %v432 = vadd.f32 %v187, %v370
  %v433 = vadd.f32 %v190, %v373
  %v434 = vadd.f32 %v195, %v378
  %v435 = vadd.f32 %v198, %v381
  %v436 = vadd.f32 %v203, %v386
  %v437 = vadd.f32 %v206, %v389
  %v438 = vadd.f32 %v211, %v394
  %v439 = vadd.f32 %v214, %v397
  %v440 = vadd.f32 %v219, %v402
  %v441 = vadd.f32 %v222, %v405
  %v442 = vadd.f32 %v227, %v410
  %v443 = vadd.f32 %v230, %v413
  %v444 = vadd.f32 %v235, %v418
  %v445 = vadd.f32 %v238, %v421
  %v446 = vadd.f32 %v243, %v426
  %v447 = vadd.f32 %v246, %v429
  %v448 = vld [vmem:[%s5] sm:$0x1]
  %v450 = vlaneseq
  %v451 = vshrl.u32 %v450, 7
  %v452 = vsub.s32 0, %v451
  %v453 = vrot.slane %v448, %v452
  %v455 = vadd.f32 %v432, %v453
  %v456 = vadd.f32 %v433, %v453
  %v457 = vadd.f32 %v434, %v453
  %v458 = vadd.f32 %v435, %v453
  %v459 = vadd.f32 %v436, %v453
  %v460 = vadd.f32 %v437, %v453
  %v461 = vadd.f32 %v438, %v453
  %v462 = vadd.f32 %v439, %v453
  %v463 = vadd.f32 %v440, %v453
  %v464 = vadd.f32 %v441, %v453
  %v465 = vadd.f32 %v442, %v453
  %v466 = vadd.f32 %v443, %v453
  %v467 = vadd.f32 %v444, %v453
  %v468 = vadd.f32 %v445, %v453
  %v469 = vadd.f32 %v446, %v453
  %v470 = vadd.f32 %v447, %v453
  %v471 = vmax.f32 %v455, 0.0
  %v472 = vmax.f32 %v456, 0.0
  %v473 = vmax.f32 %v457, 0.0
  %v474 = vmax.f32 %v458, 0.0
  %v475 = vmax.f32 %v459, 0.0
  %v476 = vmax.f32 %v460, 0.0
  %v477 = vmax.f32 %v461, 0.0
  %v478 = vmax.f32 %v462, 0.0
  %v479 = vmax.f32 %v463, 0.0
  %v480 = vmax.f32 %v464, 0.0
  %v481 = vmax.f32 %v465, 0.0
  %v482 = vmax.f32 %v466, 0.0
  %v483 = vmax.f32 %v467, 0.0
  %v484 = vmax.f32 %v468, 0.0
  %v485 = vmax.f32 %v469, 0.0
  %v486 = vmax.f32 %v470, 0.0
  %v487 = vpack.c.bf16 %v472, %v471
  %v488 = vpack.c.bf16 %v474, %v473
  %v489 = vpack.c.bf16 %v476, %v475
  %v490 = vpack.c.bf16 %v478, %v477
  %v491 = vpack.c.bf16 %v480, %v479
  %v492 = vpack.c.bf16 %v482, %v481
  %v493 = vpack.c.bf16 %v484, %v483
  %v494 = vpack.c.bf16 %v486, %v485
  %v503 = vunpack.c.l.b16 %v487
  %v504 = vunpack.c.h.b16 %v487
  %v505 = vunpack.c.l.b16 %v488
  %v506 = vunpack.c.h.b16 %v488
  %v507 = vunpack.c.l.b16 %v489
  %v508 = vunpack.c.h.b16 %v489
  %v509 = vunpack.c.l.b16 %v490
  %v510 = vunpack.c.h.b16 %v490
  %v511 = vunpack.c.l.b16 %v491
  %v512 = vunpack.c.h.b16 %v491
  %v513 = vunpack.c.l.b16 %v492
  %v514 = vunpack.c.h.b16 %v492
  %v515 = vunpack.c.l.b16 %v493
  %v516 = vunpack.c.h.b16 %v493
  %v517 = vunpack.c.l.b16 %v494
  %v518 = vunpack.c.h.b16 %v494
  %v519 = vpack.c.b16 %v503, %v503
  %v520 = vpack.c.b16 %v504, %v504
  %v521 = vpack.c.b16 %v505, %v505
  %v522 = vpack.c.b16 %v506, %v506
  %v523 = vpack.c.b16 %v507, %v507
  %v524 = vpack.c.b16 %v508, %v508
  %v525 = vpack.c.b16 %v509, %v509
  %v526 = vpack.c.b16 %v510, %v510
  %v527 = vpack.c.b16 %v511, %v511
  %v528 = vpack.c.b16 %v512, %v512
  %v529 = vpack.c.b16 %v513, %v513
  %v530 = vpack.c.b16 %v514, %v514
  %v531 = vpack.c.b16 %v515, %v515
  %v532 = vpack.c.b16 %v516, %v516
  %v533 = vpack.c.b16 %v517, %v517
  %v534 = vpack.c.b16 %v518, %v518
  %551 = vst [vmem:[%s6] sm:$0xf] %v519
  %552 = vst [vmem:[%s6 + $0x4] sm:$0xf] %v520
  %553 = vst [vmem:[%s6 + $0x8] sm:$0xf] %v521
  %554 = vst [vmem:[%s6 + $0xc] sm:$0xf] %v522
  %555 = vst [vmem:[%s6 + $0x10] sm:$0xf] %v523
  %556 = vst [vmem:[%s6 + $0x14] sm:$0xf] %v524
  %557 = vst [vmem:[%s6 + $0x18] sm:$0xf] %v525
  %558 = vst [vmem:[%s6 + $0x1c] sm:$0xf] %v526
  %559 = vst [vmem:[%s6 + $0x20] sm:$0xf] %v527
  %560 = vst [vmem:[%s6 + $0x24] sm:$0xf] %v528
  %561 = vst [vmem:[%s6 + $0x28] sm:$0xf] %v529
  %562 = vst [vmem:[%s6 + $0x2c] sm:$0xf] %v530
  %563 = vst [vmem:[%s6 + $0x30] sm:$0xf] %v531
  %564 = vst [vmem:[%s6 + $0x34] sm:$0xf] %v532
  %565 = vst [vmem:[%s6 + $0x38] sm:$0xf] %v533
  %566 = vst [vmem:[%s6 + $0x3c] sm:$0xf] %v534
  // Predicated region
  $region26: #{resnet_layer_forward.5} parent=0 // pred_check
    _
  $region27: #{resnet_layer_forward.5} parent=0 // pred_check_branch
    %568 = sbr.rel (0) target = $region29
  $region28: #{resnet_layer_forward.5} parent=0 // pred_region
    _
  $region29: #{resnet_layer_forward.5} parent=0 // pred_fallthru
    _
  // Predicated region
  $region30: #{resnet_layer_forward.5} parent=0 // pred_check
    _
  $region31: #{resnet_layer_forward.5} parent=0 // pred_check_branch
    %570 = sbr.rel (0) target = $region33
  $region32: #{resnet_layer_forward.5} parent=0 // pred_region
    _
  $region33: #{resnet_layer_forward.5} parent=0 // pred_fallthru
    _

// kernel: resnet_layer_forward.7
$region0: #{resnet_layer_forward.7}
  #allocation0 [shape = 'u32[]', space=smem, size = 0x4, offset = 0x4, fixed_abs, tag = 'smem constant byte address 0x4 - core index']
  #allocation1 [shape = 'u32[144,128]{1,0:T(1,128)}', space=vmem, size = 0x12000, scoped, tag = 'internal scratch']
  %s0 = inlined_call_operand.vmem [shape: bf16[128,72], index: 0, kind: input, shape index: {}]
  %s1 = inlined_call_operand.vmem [shape: bf16[72,128], index: 1, kind: input, shape index: {}]
  %s2 = inlined_call_operand.vmem [shape: f32[1,128], index: 2, kind: input, shape index: {}]
  %s3 = inlined_call_operand.vmem [shape: bf16[128,128], index: 3, kind: input, shape index: {}]
  %s4 = inlined_call_operand.vmem [shape: bf16[128,128], index: 4, kind: output, shape index: {}]
  %s5 = sld [smem:[#allocation0]]
  $region26: #{resnet_layer_forward.7} parent=0
    _
  %s7 = ssub.s32 1, %s5
  %s8 = scalar_select 0, %s7, %s5
  // Predicated region
  $region2: #{resnet_layer_forward.7} parent=0 // pred_check
    _
  $region3: #{resnet_layer_forward.7} parent=0 // pred_check_branch
    %10 = sbr.rel (0) target = $region5
  $region4: #{resnet_layer_forward.7} parent=0 // pred_region
    _
  $region5: #{resnet_layer_forward.7} parent=0 // pred_fallthru
    _
  // Predicated region
  $region6: #{resnet_layer_forward.7} parent=0 // pred_check
    _
  $region7: #{resnet_layer_forward.7} parent=0 // pred_check_branch
    %12 = sbr.rel (0) target = $region9
  $region8: #{resnet_layer_forward.7} parent=0 // pred_region
    _
  $region9: #{resnet_layer_forward.7} parent=0 // pred_fallthru
    _
  // Predicated region
  $region10: #{resnet_layer_forward.7} parent=0 // pred_check
    _
  $region11: #{resnet_layer_forward.7} parent=0 // pred_check_branch
    %14 = sbr.rel (0) target = $region13
  $region12: #{resnet_layer_forward.7} parent=0 // pred_region
    _
  $region13: #{resnet_layer_forward.7} parent=0 // pred_fallthru
    _
  // Predicated region
  $region14: #{resnet_layer_forward.7} parent=0 // pred_check
    _
  $region15: #{resnet_layer_forward.7} parent=0 // pred_check_branch
    %16 = sbr.rel (0) target = $region17
  $region16: #{resnet_layer_forward.7} parent=0 // pred_region
    _
  $region17: #{resnet_layer_forward.7} parent=0 // pred_fallthru
    _
  %v18 = vld [vmem:[%s0] sm:$0xf]
  %v19 = vld [vmem:[%s0 + $0x4] sm:$0xf]
  %v20 = vld [vmem:[%s0 + $0x8] sm:$0xf]
  %v21 = vld [vmem:[%s0 + $0xc] sm:$0xf]
  %v22 = vld [vmem:[%s0 + $0x10] sm:$0xf]
  %v23 = vld [vmem:[%s0 + $0x14] sm:$0xf]
  %v24 = vld [vmem:[%s0 + $0x18] sm:$0xf]
  %v25 = vld [vmem:[%s0 + $0x1c] sm:$0xf]
  %v26 = vld [vmem:[%s0 + $0x20] sm:$0xf]
  %v27 = vld [vmem:[%s0 + $0x24] sm:$0xf]
  %v28 = vld [vmem:[%s0 + $0x28] sm:$0xf]
  %v29 = vld [vmem:[%s0 + $0x2c] sm:$0xf]
  %v30 = vld [vmem:[%s0 + $0x30] sm:$0xf]
  %v31 = vld [vmem:[%s0 + $0x34] sm:$0xf]
  %v32 = vld [vmem:[%s0 + $0x38] sm:$0xf]
  %v33 = vld [vmem:[%s0 + $0x3c] sm:$0xf]
  %v34 = vld [vmem:[%s1] sm:$0xf]
  %v35 = vld [vmem:[%s1 + $0x4] sm:$0xf]
  %v36 = vld [vmem:[%s1 + $0x8] sm:$0xf]
  %v37 = vld [vmem:[%s1 + $0xc] sm:$0xf]
  %v38 = vld [vmem:[%s1 + $0x10] sm:$0xf]
  %v39 = vld [vmem:[%s1 + $0x14] sm:$0xf]
  %v40 = vld [vmem:[%s1 + $0x18] sm:$0xf]
  %v41 = vld [vmem:[%s1 + $0x1c] sm:$0xf]
  %v42 = vld [vmem:[%s1 + $0x20] sm:$0xf]
  %v43 = vld [vmem:[%s2] sm:$0x1]
  %v45 = vlaneseq
  %v46 = vshrl.u32 %v45, 7
  %v47 = vsub.s32 0, %v46
  %v48 = vrot.slane %v43, %v47
  %v66 = vunpack.c.l.b16 %v18
  %v67 = vunpack.c.l.b16 %v19
  %v68 = vunpack.c.l.b16 %v20
  %v69 = vunpack.c.l.b16 %v21
  %v70 = vunpack.c.l.b16 %v22
  %v71 = vunpack.c.l.b16 %v23
  %v72 = vunpack.c.l.b16 %v24
  %v73 = vunpack.c.l.b16 %v25
  %v74 = vunpack.c.l.b16 %v26
  %v75 = vunpack.c.l.b16 %v27
  %v76 = vunpack.c.l.b16 %v28
  %v77 = vunpack.c.l.b16 %v29
  %v78 = vunpack.c.l.b16 %v30
  %v79 = vunpack.c.l.b16 %v31
  %v80 = vunpack.c.l.b16 %v32
  %v81 = vunpack.c.l.b16 %v33
  %v82 = vpack.c.b16 %v67, %v66
  %v83 = vpack.c.b16 %v69, %v68
  %v84 = vpack.c.b16 %v71, %v70
  %v85 = vpack.c.b16 %v73, %v72
  %v86 = vpack.c.b16 %v75, %v74
  %v87 = vpack.c.b16 %v77, %v76
  %v88 = vpack.c.b16 %v79, %v78
  %v89 = vpack.c.b16 %v81, %v80
  %v99 = vunpack.c.l.b16 %v34
  %v100 = vunpack.c.l.b16 %v35
  %v101 = vunpack.c.l.b16 %v36
  %v102 = vunpack.c.l.b16 %v37
  %v103 = vunpack.c.l.b16 %v38
  %v104 = vunpack.c.l.b16 %v39
  %v105 = vunpack.c.l.b16 %v40
  %v106 = vunpack.c.l.b16 %v41
  %v107 = vunpack.c.l.b16 %v42
  %v108 = vpack.c.b16 %v100, %v99
  %v109 = vpack.c.b16 %v102, %v101
  %v110 = vpack.c.b16 %v104, %v103
  %v111 = vpack.c.b16 %v106, %v105
  %v112 = vpack.c.b16 %v107, %v107
  %vm117 = vcmask 588800
  %v119 = vsel %vm117, %v82, 0
  %v122 = vsel %vm117, %v83, 0
  %v125 = vsel %vm117, %v84, 0
  %v128 = vsel %vm117, %v85, 0
  %v131 = vsel %vm117, %v86, 0
  %v134 = vsel %vm117, %v87, 0
  %v137 = vsel %vm117, %v88, 0
  %v140 = vsel %vm117, %v89, 0
  %vm142 = vcmask 1043456
  %v144 = vsel %vm142, %v112, 0
  %146 = vmatprep.subr.bf16.mxu0 0
  %147 = vmatpush1.bf16.msra.mxu0 %v108
  %148 = vmatprep.subr.bf16.mxu0 0
  %149 = vmatpush1.bf16.msra.mxu0 %v109
  %150 = vmatprep.subr.bf16.mxu0 0
  %151 = vmatpush1.bf16.msra.mxu0 %v110
  %152 = vmatprep.subr.bf16.mxu0 0
  %153 = vmatpush1.bf16.msra.mxu0 %v111
  %154 = vmatprep.subr.bf16.mxu0 0
  %155 = vmatpush1.bf16.msra.mxu0 %v144
  %156 = vmatprep.subr.bf16.mxu0 0
  %157 = vmatpush1.bf16.msra.mxu0 0
  %158 = vmatprep.subr.bf16.mxu0 0
  %159 = vmatpush1.bf16.msra.mxu0 0
  %160 = vmatprep.subr.bf16.mxu0 0
  %161 = vmatpush1.bf16.msra.mxu0 0
  %162 = vmatprep.subr.bf16.mxu0 0
  %163 = vmatpush1.bf16.msra.mxu0 0
  %164 = vmatprep.subr.bf16.mxu0 0
  %165 = vmatpush1.bf16.msra.mxu0 0
  %166 = vmatprep.subr.bf16.mxu0 0
  %167 = vmatpush1.bf16.msra.mxu0 0
  %168 = vmatprep.subr.bf16.mxu0 0
  %169 = vmatpush1.bf16.msra.mxu0 0
  %170 = vmatprep.subr.bf16.mxu0 0
  %171 = vmatpush1.bf16.msra.mxu0 0
  %172 = vmatprep.subr.bf16.mxu0 0
  %173 = vmatpush1.bf16.msra.mxu0 0
  %174 = vmatprep.subr.bf16.mxu0 0
  %175 = vmatpush1.bf16.msra.mxu0 0
  %176 = vmatprep.subr.bf16.mxu0 0
  %177 = vmatpush1.bf16.msra.mxu0 0
  %178 = vmatprep.mubr.bf16.mxu0 0
  %179 = vmatmul.mubr.bf16.gmra.mrb[0].mxu0 %v119
  %v180 = vpop.f32.mrb[0].mxu0
  %v181 = vadd.f32 %v48, %v180
  %v182 = vpop.f32.mrb[0].mxu0
  %v183 = vpop.f32.mrb[0].mxu0
  %v184 = vadd.f32 %v48, %v183
  %v185 = vpop.f32.mrb[0].mxu0
  %186 = vmatprep.mubr.bf16.mxu0 0
  %187 = vmatmul.mubr.bf16.gmra.mrb[0].mxu0 %v122
  %v188 = vpop.f32.mrb[0].mxu0
  %v189 = vadd.f32 %v48, %v188
  %v190 = vpop.f32.mrb[0].mxu0
  %v191 = vpop.f32.mrb[0].mxu0
  %v192 = vadd.f32 %v48, %v191
  %v193 = vpop.f32.mrb[0].mxu0
  %194 = vmatprep.mubr.bf16.mxu0 0
  %195 = vmatmul.mubr.bf16.gmra.mrb[0].mxu0 %v125
  %v196 = vpop.f32.mrb[0].mxu0
  %v197 = vadd.f32 %v48, %v196
  %v198 = vpop.f32.mrb[0].mxu0
  %v199 = vpop.f32.mrb[0].mxu0
  %v200 = vadd.f32 %v48, %v199
  %v201 = vpop.f32.mrb[0].mxu0
  %202 = vmatprep.mubr.bf16.mxu0 0
  %203 = vmatmul.mubr.bf16.gmra.mrb[0].mxu0 %v128
  %v204 = vpop.f32.mrb[0].mxu0
  %v205 = vadd.f32 %v48, %v204
  %v206 = vpop.f32.mrb[0].mxu0
  %v207 = vpop.f32.mrb[0].mxu0
  %v208 = vadd.f32 %v48, %v207
  %v209 = vpop.f32.mrb[0].mxu0
  %210 = vmatprep.mubr.bf16.mxu0 0
  %211 = vmatmul.mubr.bf16.gmra.mrb[0].mxu0 %v131
  %v212 = vpop.f32.mrb[0].mxu0
  %v213 = vadd.f32 %v48, %v212
  %v214 = vpop.f32.mrb[0].mxu0
  %v215 = vpop.f32.mrb[0].mxu0
  %v216 = vadd.f32 %v48, %v215
  %v217 = vpop.f32.mrb[0].mxu0
  %218 = vmatprep.mubr.bf16.mxu0 0
  %219 = vmatmul.mubr.bf16.gmra.mrb[0].mxu0 %v134
  %v220 = vpop.f32.mrb[0].mxu0
  %v221 = vadd.f32 %v48, %v220
  %v222 = vpop.f32.mrb[0].mxu0
  %v223 = vpop.f32.mrb[0].mxu0
  %v224 = vadd.f32 %v48, %v223
  %v225 = vpop.f32.mrb[0].mxu0
  %226 = vmatprep.mubr.bf16.mxu0 0
  %227 = vmatmul.mubr.bf16.gmra.mrb[0].mxu0 %v137
  %v228 = vpop.f32.mrb[0].mxu0
  %v229 = vadd.f32 %v48, %v228
  %v230 = vpop.f32.mrb[0].mxu0
  %v231 = vpop.f32.mrb[0].mxu0
  %v232 = vadd.f32 %v48, %v231
  %v233 = vpop.f32.mrb[0].mxu0
  %234 = vmatprep.mubr.bf16.mxu0 0
  %235 = vmatmul.mubr.bf16.gmra.mrb[0].mxu0 %v140
  %v236 = vpop.f32.mrb[0].mxu0
  %v237 = vadd.f32 %v48, %v236
  %v238 = vpop.f32.mrb[0].mxu0
  %v239 = vpop.f32.mrb[0].mxu0
  %v240 = vadd.f32 %v48, %v239
  %v241 = vpop.f32.mrb[0].mxu0
  %242 = vdwg.mxu0
  %v243 = vld [vmem:[%s3] sm:$0xf]
  %v244 = vld [vmem:[%s3 + $0x4] sm:$0xf]
  %v245 = vld [vmem:[%s3 + $0x8] sm:$0xf]
  %v246 = vld [vmem:[%s3 + $0xc] sm:$0xf]
  %v247 = vld [vmem:[%s3 + $0x10] sm:$0xf]
  %v248 = vld [vmem:[%s3 + $0x14] sm:$0xf]
  %v249 = vld [vmem:[%s3 + $0x18] sm:$0xf]
  %v250 = vld [vmem:[%s3 + $0x1c] sm:$0xf]
  %v251 = vld [vmem:[%s3 + $0x20] sm:$0xf]
  %v252 = vld [vmem:[%s3 + $0x24] sm:$0xf]
  %v253 = vld [vmem:[%s3 + $0x28] sm:$0xf]
  %v254 = vld [vmem:[%s3 + $0x2c] sm:$0xf]
  %v255 = vld [vmem:[%s3 + $0x30] sm:$0xf]
  %v256 = vld [vmem:[%s3 + $0x34] sm:$0xf]
  %v257 = vld [vmem:[%s3 + $0x38] sm:$0xf]
  %v258 = vld [vmem:[%s3 + $0x3c] sm:$0xf]
  %v259 = vunpack.c.l.bf16 %v243
  %v260 = vunpack.c.l.bf16 %v244
  %v261 = vunpack.c.l.bf16 %v245
  %v262 = vunpack.c.l.bf16 %v246
  %v263 = vunpack.c.l.bf16 %v247
  %v264 = vunpack.c.l.bf16 %v248
  %v265 = vunpack.c.l.bf16 %v249
  %v266 = vunpack.c.l.bf16 %v250
  %v267 = vunpack.c.l.bf16 %v251
  %v268 = vunpack.c.l.bf16 %v252
  %v269 = vunpack.c.l.bf16 %v253
  %v270 = vunpack.c.l.bf16 %v254
  %v271 = vunpack.c.l.bf16 %v255
  %v272 = vunpack.c.l.bf16 %v256
  %v273 = vunpack.c.l.bf16 %v257
  %v274 = vunpack.c.l.bf16 %v258
  %v275 = vadd.f32 %v181, %v259
  %v276 = vadd.f32 %v184, %v260
  %v277 = vadd.f32 %v189, %v261
  %v278 = vadd.f32 %v192, %v262
  %v279 = vadd.f32 %v197, %v263
  %v280 = vadd.f32 %v200, %v264
  %v281 = vadd.f32 %v205, %v265
  %v282 = vadd.f32 %v208, %v266
  %v283 = vadd.f32 %v213, %v267
  %v284 = vadd.f32 %v216, %v268
  %v285 = vadd.f32 %v221, %v269
  %v286 = vadd.f32 %v224, %v270
  %v287 = vadd.f32 %v229, %v271
  %v288 = vadd.f32 %v232, %v272
  %v289 = vadd.f32 %v237, %v273
  %v290 = vadd.f32 %v240, %v274
  %v291 = vmax.f32 %v275, 0.0
  %v292 = vmax.f32 %v276, 0.0
  %v293 = vmax.f32 %v277, 0.0
  %v294 = vmax.f32 %v278, 0.0
  %v295 = vmax.f32 %v279, 0.0
  %v296 = vmax.f32 %v280, 0.0
  %v297 = vmax.f32 %v281, 0.0
  %v298 = vmax.f32 %v282, 0.0
  %v299 = vmax.f32 %v283, 0.0
  %v300 = vmax.f32 %v284, 0.0
  %v301 = vmax.f32 %v285, 0.0
  %v302 = vmax.f32 %v286, 0.0
  %v303 = vmax.f32 %v287, 0.0
  %v304 = vmax.f32 %v288, 0.0
  %v305 = vmax.f32 %v289, 0.0
  %v306 = vmax.f32 %v290, 0.0
  %v307 = vpack.c.bf16 %v292, %v291
  %v308 = vpack.c.bf16 %v294, %v293
  %v309 = vpack.c.bf16 %v296, %v295
  %v310 = vpack.c.bf16 %v298, %v297
  %v311 = vpack.c.bf16 %v300, %v299
  %v312 = vpack.c.bf16 %v302, %v301
  %v313 = vpack.c.bf16 %v304, %v303
  %v314 = vpack.c.bf16 %v306, %v305
  %v323 = vunpack.c.l.b16 %v307
  %v324 = vunpack.c.h.b16 %v307
  %v325 = vunpack.c.l.b16 %v308
  %v326 = vunpack.c.h.b16 %v308
  %v327 = vunpack.c.l.b16 %v309
  %v328 = vunpack.c.h.b16 %v309
  %v329 = vunpack.c.l.b16 %v310
  %v330 = vunpack.c.h.b16 %v310
  %v331 = vunpack.c.l.b16 %v311
  %v332 = vunpack.c.h.b16 %v311
  %v333 = vunpack.c.l.b16 %v312
  %v334 = vunpack.c.h.b16 %v312
  %v335 = vunpack.c.l.b16 %v313
  %v336 = vunpack.c.h.b16 %v313
  %v337 = vunpack.c.l.b16 %v314
  %v338 = vunpack.c.h.b16 %v314
  %v339 = vpack.c.b16 %v323, %v323
  %v340 = vpack.c.b16 %v324, %v324
  %v341 = vpack.c.b16 %v325, %v325
  %v342 = vpack.c.b16 %v326, %v326
  %v343 = vpack.c.b16 %v327, %v327
  %v344 = vpack.c.b16 %v328, %v328
  %v345 = vpack.c.b16 %v329, %v329
  %v346 = vpack.c.b16 %v330, %v330
  %v347 = vpack.c.b16 %v331, %v331
  %v348 = vpack.c.b16 %v332, %v332
  %v349 = vpack.c.b16 %v333, %v333
  %v350 = vpack.c.b16 %v334, %v334
  %v351 = vpack.c.b16 %v335, %v335
  %v352 = vpack.c.b16 %v336, %v336
  %v353 = vpack.c.b16 %v337, %v337
  %v354 = vpack.c.b16 %v338, %v338
  %371 = vst [vmem:[%s4] sm:$0xf] %v339
  %372 = vst [vmem:[%s4 + $0x4] sm:$0xf] %v340
  %373 = vst [vmem:[%s4 + $0x8] sm:$0xf] %v341
  %374 = vst [vmem:[%s4 + $0xc] sm:$0xf] %v342
  %375 = vst [vmem:[%s4 + $0x10] sm:$0xf] %v343
  %376 = vst [vmem:[%s4 + $0x14] sm:$0xf] %v344
  %377 = vst [vmem:[%s4 + $0x18] sm:$0xf] %v345
  %378 = vst [vmem:[%s4 + $0x1c] sm:$0xf] %v346
  %379 = vst [vmem:[%s4 + $0x20] sm:$0xf] %v347
  %380 = vst [vmem:[%s4 + $0x24] sm:$0xf] %v348
  %381 = vst [vmem:[%s4 + $0x28] sm:$0xf] %v349
  %382 = vst [vmem:[%s4 + $0x2c] sm:$0xf] %v350
  %383 = vst [vmem:[%s4 + $0x30] sm:$0xf] %v351
  %384 = vst [vmem:[%s4 + $0x34] sm:$0xf] %v352
  %385 = vst [vmem:[%s4 + $0x38] sm:$0xf] %v353
  %386 = vst [vmem:[%s4 + $0x3c] sm:$0xf] %v354
  // Predicated region
  $region18: #{resnet_layer_forward.7} parent=0 // pred_check
    _
  $region19: #{resnet_layer_forward.7} parent=0 // pred_check_branch
    %388 = sbr.rel (0) target = $region21
  $region20: #{resnet_layer_forward.7} parent=0 // pred_region
    _
  $region21: #{resnet_layer_forward.7} parent=0 // pred_fallthru
    _
  // Predicated region
  $region22: #{resnet_layer_forward.7} parent=0 // pred_check
    _
  $region23: #{resnet_layer_forward.7} parent=0 // pred_check_branch
    %390 = sbr.rel (0) target = $region25
  $region24: #{resnet_layer_forward.7} parent=0 // pred_region
    _
  $region25: #{resnet_layer_forward.7} parent=0 // pred_fallthru
    _

</llo_original>
